<compile_context>
chip_gen: v5e
topology: v5e:2x2
jax: 0.10.0
libtpu: 0.0.40
codegen_flags: <defaults>
</compile_context>

<pallas_src>
import functools
import math

import jax
import jax.numpy as jnp
from jax.experimental import pallas as pl
from jax.experimental.pallas import tpu as pltpu

_PREC = jax.lax.Precision.HIGHEST


def _round_up(x, m):
    return ((x + m - 1) // m) * m


def _ac_seq_kernel(obs_ref, mask_ref, h0_ref, w_ref, b_ref, out_ref, h_scr,
                   *, obs_dim, H, F, A):
    """One grid step == one environment timestep.  Hidden state lives in VMEM
    scratch across the whole grid; weights/biases are resident (constant
    index_map)."""
    f32 = jnp.float32
    B = obs_ref.shape[0]
    out_w = out_ref.shape[1]

    # Reset the carried hidden state from the h0 operand on the first step.
    @pl.when(pl.program_id(0) == 0)
    def _():
        h_scr[...] = h0_ref[...]

    # ---- static slab offsets (python ints -> zero-cost slicing) ----
    def p8(n):
        return _round_up(n, 8)

    r_in = 0
    r_gx = r_in + p8(obs_dim)
    r_gh = r_gx + p8(H)
    r_av = r_gh + p8(H)
    r_pi = r_av + p8(H)

    w_in = w_ref[r_in:r_in + obs_dim, :H]          # (OBS, H)
    w_gx = w_ref[r_gx:r_gx + H, :3 * H]            # (H, 3H) = [r | z | n_x]
    w_gh = w_ref[r_gh:r_gh + H, :3 * H]            # (H, 3H) = [r | z | n_h]
    w_av = w_ref[r_av:r_av + H, :F + 1]            # (H, F+1) = [af | v]
    w_pi = w_ref[r_pi:r_pi + F, :A]                # (F, A)

    # biases pre-broadcast to B sublanes at init -> plain VPU adds here
    b_in = b_ref[0 * B:1 * B, :H]
    b_gx = b_ref[1 * B:2 * B, :3 * H]
    b_gh = b_ref[2 * B:3 * B, :3 * H]
    b_av = b_ref[3 * B:4 * B, :F + 1]
    b_pi = b_ref[4 * B:5 * B, :A]

    obs = obs_ref[...]                             # (B, OBS)
    h = h_scr[...] * mask_ref[...]                 # (B, H), masked hidden state

    # ---- base MLP input layer ----
    x = jnp.tanh(
        jnp.dot(obs, w_in, preferred_element_type=f32, precision=_PREC) + b_in)

    # ---- GRU cell: two (H,3H) matmuls, shared r/z columns summed on VPU ----
    gx = jnp.dot(x, w_gx, preferred_element_type=f32, precision=_PREC) + b_gx
    gh = jnp.dot(h, w_gh, preferred_element_type=f32, precision=_PREC) + b_gh
    r = jax.nn.sigmoid(gx[:, :H] + gh[:, :H])
    z = jax.nn.sigmoid(gx[:, H:2 * H] + gh[:, H:2 * H])
    n = jnp.tanh(gx[:, 2 * H:3 * H] + r * gh[:, 2 * H:3 * H])
    h_n = (1.0 - z) * n + z * h
    h_scr[...] = h_n                               # carry to the next timestep

    # ---- fused actor-feature + critic head: h_n @ [W_af | W_v] ----
    av = jnp.dot(h_n, w_av, preferred_element_type=f32, precision=_PREC) + b_av
    af = jnp.tanh(av[:, :F])
    value = av[:, F:F + 1]

    # ---- Categorical head: deterministic action = argmax(logits) ----
    logits = jnp.dot(af, w_pi, preferred_element_type=f32, precision=_PREC) + b_pi
    m = jnp.max(logits, axis=-1, keepdims=True)
    # log-prob of the argmax action == max - logsumexp == -log(sum exp(l - max))
    logp = -jnp.log(jnp.sum(jnp.exp(logits - m), axis=-1, keepdims=True))
    lane = jax.lax.broadcasted_iota(jnp.int32, logits.shape, 1)
    action_i = jnp.min(jnp.where(logits == m, lane, A), axis=-1, keepdims=True)
    # encode the action index as f32; exact while action_dim << 2**24
    action = action_i.astype(f32)

    # ---- direct slice stores into the lane-dense (B, out_w) output block ----
    out_ref[:, :H] = h_n
    out_ref[:, H:H + 1] = value
    out_ref[:, H + 1:H + 2] = logp
    out_ref[:, H + 2:H + 3] = action
    out_ref[:, H + 3:] = jnp.zeros((B, out_w - (H + 3)), f32)


@functools.partial(jax.jit, static_argnames=("hidden_feature_dim", "action_dim"))
def ac_act_rollout(obs_seq, hidden_states, masks_seq, w_slab, b_slab, *,
                   hidden_feature_dim, action_dim):
    """Run AC.act() for T consecutive timesteps inside one Pallas call.

    obs_seq:   (T, B, OBS)   masks_seq: (T, B, 1)   hidden_states: (B, H)
    Returns (values, actions, h_seq, log_probs), each with leading (T, B, ...).
    """
    T, B, obs_dim = obs_seq.shape
    H = hidden_states.shape[1]
    F, A = hidden_feature_dim, action_dim
    out_w = _round_up(max(H + 3, 128), 128)

    kernel = functools.partial(_ac_seq_kernel, obs_dim=obs_dim, H=H, F=F, A=A)

    flops = 2 * T * B * (obs_dim * H + 2 * H * 3 * H + H * (F + 1) + F * A)
    transcendentals = T * B * (4 * H + F + A + 1)
    bytes_accessed = 4 * (obs_seq.size + masks_seq.size + hidden_states.size
                          + w_slab.size + b_slab.size + T * B * out_w)

    grid_spec = pltpu.PrefetchScalarGridSpec(
        num_scalar_prefetch=0,
        grid=(T,),
        in_specs=[
            # per-step streamed tiles (double-buffered by the pipeline)
            pl.BlockSpec((None, B, obs_dim), lambda t: (t, 0, 0)),
            pl.BlockSpec((None, B, 1), lambda t: (t, 0, 0)),
            # resident operands (constant index_map -> DMA'd once)
            pl.BlockSpec((B, H), lambda t: (0, 0)),
            pl.BlockSpec(w_slab.shape, lambda t: (0, 0)),
            pl.BlockSpec(b_slab.shape, lambda t: (0, 0)),
        ],
        out_specs=pl.BlockSpec((None, B, out_w), lambda t: (t, 0, 0)),
        scratch_shapes=[pltpu.VMEM((B, H), jnp.float32)],  # carried hidden state
    )

    packed = pl.pallas_call(
        kernel,
        grid_spec=grid_spec,
        out_shape=jax.ShapeDtypeStruct((T, B, out_w), jnp.float32),
        compiler_params=pltpu.CompilerParams(
            dimension_semantics=("arbitrary",)),  # sequential recurrence over T
        cost_estimate=pl.CostEstimate(
            flops=flops, transcendentals=transcendentals,
            bytes_accessed=bytes_accessed),
    )(obs_seq, masks_seq, hidden_states, w_slab, b_slab)

    h_seq = packed[:, :, :H]
    values = packed[:, :, H:H + 1]
    log_probs = packed[:, :, H + 1:H + 2]
    actions = jnp.round(packed[:, :, H + 2:H + 3]).astype(jnp.int32)
    return values, actions, h_seq, log_probs


def ac_act(obs, hidden_states, masks, w_slab, b_slab, *, hidden_feature_dim,
           action_dim):
    """Single-timestep AC.act() (T=1 call into the rollout kernel)."""
    v, a, h, lp = ac_act_rollout(
        obs[None], hidden_states, masks[None], w_slab, b_slab,
        hidden_feature_dim=hidden_feature_dim, action_dim=action_dim)
    return v[0], a[0], h[0], lp[0]


def init_params(key, obs_dim, hidden_state_dim, hidden_feature_dim, action_dim,
                batch):
    """Deterministic synthetic parameters, pre-fused into two slabs."""
    H, F, A = hidden_state_dim, hidden_feature_dim, action_dim
    ks = jax.random.split(key, 20)

    def unif(k, shape, fan_in):
        s = 1.0 / math.sqrt(fan_in)
        return jax.random.uniform(k, shape, jnp.float32, -s, s)

    raw = dict(
        w_in=unif(ks[0], (obs_dim, H), obs_dim), b_in=unif(ks[1], (H,), obs_dim),
        w_ir=unif(ks[2], (H, H), H), w_iz=unif(ks[3], (H, H), H),
        w_inx=unif(ks[4], (H, H), H),
        w_hr=unif(ks[5], (H, H), H), w_hz=unif(ks[6], (H, H), H),
        w_hn=unif(ks[7], (H, H), H),
        b_ir=unif(ks[8], (H,), H), b_iz=unif(ks[9], (H,), H),
        b_inx=unif(ks[10], (H,), H),
        b_hr=unif(ks[11], (H,), H), b_hz=unif(ks[12], (H,), H),
        b_hn=unif(ks[13], (H,), H),
        w_af=unif(ks[14], (H, F), H), b_af=unif(ks[15], (F,), H),
        w_v=unif(ks[16], (H, 1), H), b_v=unif(ks[17], (1,), H),
        w_pi=unif(ks[18], (F, A), F), b_pi=unif(ks[19], (A,), F),
    )

    lane_w = _round_up(max(H, 3 * H, F + 1, A, 128), 128)

    def pad_rows(m):
        rows = _round_up(m.shape[0], 8)
        return jnp.pad(m, ((0, rows - m.shape[0]), (0, lane_w - m.shape[1])))

    w_gx = jnp.concatenate([raw["w_ir"], raw["w_iz"], raw["w_inx"]], axis=1)
    w_gh = jnp.concatenate([raw["w_hr"], raw["w_hz"], raw["w_hn"]], axis=1)
    w_av = jnp.concatenate([raw["w_af"], raw["w_v"]], axis=1)

    # single weight slab: [w_in ; w_gx ; w_gh ; w_av ; w_pi], rows 8-padded
    w_slab = jnp.concatenate(
        [pad_rows(raw["w_in"]), pad_rows(w_gx), pad_rows(w_gh),
         pad_rows(w_av), pad_rows(raw["w_pi"])], axis=0)

    def bias_rows(v):
        # pre-broadcast to `batch` sublanes -> plain VPU adds in the kernel
        row = jnp.broadcast_to(v.reshape(1, -1), (batch, v.shape[-1]))
        return jnp.pad(row, ((0, 0), (0, lane_w - v.shape[-1])))

    b_gx = jnp.concatenate([raw["b_ir"], raw["b_iz"], raw["b_inx"]])
    b_gh = jnp.concatenate([raw["b_hr"], raw["b_hz"], raw["b_hn"]])
    b_av = jnp.concatenate([raw["b_af"], raw["b_v"]])

    b_slab = jnp.concatenate(
        [bias_rows(raw["b_in"]), bias_rows(b_gx), bias_rows(b_gh),
         bias_rows(b_av), bias_rows(raw["b_pi"])], axis=0)

    return dict(w_slab=w_slab, b_slab=b_slab, raw=raw)


def ref_rollout(obs_seq, h0, masks_seq, raw):
    """Pure-JAX reference of the same recurrence (for correctness checking)."""
    dot = functools.partial(jnp.dot, precision=_PREC)

    def step(h, inp):
        obs, mask = inp
        x = jnp.tanh(dot(obs, raw["w_in"]) + raw["b_in"])
        hm = h * mask
        r = jax.nn.sigmoid(dot(x, raw["w_ir"]) + raw["b_ir"]
                           + dot(hm, raw["w_hr"]) + raw["b_hr"])
        z = jax.nn.sigmoid(dot(x, raw["w_iz"]) + raw["b_iz"]
                           + dot(hm, raw["w_hz"]) + raw["b_hz"])
        n = jnp.tanh(dot(x, raw["w_inx"]) + raw["b_inx"]
                     + r * (dot(hm, raw["w_hn"]) + raw["b_hn"]))
        h_n = (1.0 - z) * n + z * hm
        af = jnp.tanh(dot(h_n, raw["w_af"]) + raw["b_af"])
        value = dot(h_n, raw["w_v"]) + raw["b_v"]
        logits = dot(af, raw["w_pi"]) + raw["b_pi"]
        logp_all = jax.nn.log_softmax(logits, axis=-1)
        action = jnp.argmax(logits, axis=-1)
        lp = jnp.take_along_axis(logp_all, action[:, None], axis=-1)
        return h_n, (value, action[:, None].astype(jnp.int32), h_n, lp)

    _, outs = jax.lax.scan(step, h0, (obs_seq, masks_seq))
    return outs  # values, actions, h_seq, log_probs


if __name__ == "__main__":
    key = jax.random.PRNGKey(0)
    k_obs, k_h, k_m, k_p = jax.random.split(key, 4)

    T = 8                 # rollout timesteps (in-kernel grid)
    B = 8                 # batch (num envs)
    OBS = 16              # obs_shape
    HID_STATE = 32        # hidden_state_shape
    HID_FEAT = 32         # hidden_feature_shape
    ACT = 4               # action_shape (discrete)

    obs_seq = jax.random.normal(k_obs, (T, B, OBS), jnp.float32)
    hidden_states = jax.random.normal(k_h, (B, HID_STATE), jnp.float32)
    # masks: mostly 1.0 with occasional episode resets
    masks_seq = (jax.random.uniform(k_m, (T, B, 1)) > 0.15).astype(jnp.float32)

    params = init_params(k_p, OBS, HID_STATE, HID_FEAT, ACT, batch=B)

    values, actions, h_seq, log_probs = ac_act_rollout(
        obs_seq, hidden_states, masks_seq, params["w_slab"], params["b_slab"],
        hidden_feature_dim=HID_FEAT, action_dim=ACT)
    jax.block_until_ready((values, actions, h_seq, log_probs))

    # structural sanity
    assert values.shape == (T, B, 1)
    assert actions.shape == (T, B, 1) and actions.dtype == jnp.int32
    assert h_seq.shape == (T, B, HID_STATE)
    assert log_probs.shape == (T, B, 1)
    assert bool(jnp.all((actions >= 0) & (actions < ACT)))
    assert bool(jnp.all(jnp.isfinite(log_probs))) and bool(jnp.all(log_probs <= 0.0))

    # numerical check against the pure-JAX reference of the same recurrence
    r_values, r_actions, r_h_seq, r_logp = ref_rollout(
        obs_seq, hidden_states, masks_seq, params["raw"])
    assert bool(jnp.allclose(values, r_values, atol=2e-3, rtol=2e-3))
    assert bool(jnp.allclose(h_seq, r_h_seq, atol=2e-3, rtol=2e-3))
    assert bool(jnp.allclose(log_probs, r_logp, atol=2e-3, rtol=2e-3))
    assert bool(jnp.all(actions == r_actions))

    # single-timestep path (AC.act called once per env step)
    v1, a1, h1, lp1 = ac_act(
        obs_seq[0], hidden_states, masks_seq[0],
        params["w_slab"], params["b_slab"],
        hidden_feature_dim=HID_FEAT, action_dim=ACT)
    jax.block_until_ready((v1, a1, h1, lp1))
    assert v1.shape == (B, 1) and a1.shape == (B, 1)
    assert h1.shape == (B, HID_STATE) and lp1.shape == (B, 1)

    print("KERNEL_OK")
</pallas_src>

<mosaic_0001>
module attributes {stable_mosaic.version = 11 : i64} {
  func.func @_ac_seq_kernel(%arg0: i32, %arg1: memref<1x8x16xf32, #tpu.memory_space<vmem>>, %arg2: memref<1x8x1xf32, #tpu.memory_space<vmem>>, %arg3: memref<8x32xf32, #tpu.memory_space<vmem>>, %arg4: memref<144x128xf32, #tpu.memory_space<vmem>>, %arg5: memref<40x128xf32, #tpu.memory_space<vmem>>, %arg6: memref<1x8x128xf32, #tpu.memory_space<vmem>>, %arg7: memref<8x32xf32, #tpu.memory_space<vmem>>) attributes {dimension_semantics = [#tpu.dimension_semantics<arbitrary>], iteration_bounds = array<i64: 8>, scalar_prefetch = 0 : i64, scratch_operands = 1 : i64, tpu.core_type = #tpu.core_type<tc>, window_params = [{transform_indices = @transform_0, window_bounds = array<i64: 1, 8, 16>}, {transform_indices = @transform_1, window_bounds = array<i64: 1, 8, 1>}, {pipeline_mode = #tpu.pipeline_mode<synchronous>, transform_indices = @transform_2, window_bounds = array<i64: 8, 32>}, {pipeline_mode = #tpu.pipeline_mode<synchronous>, transform_indices = @transform_3, window_bounds = array<i64: 144, 128>}, {pipeline_mode = #tpu.pipeline_mode<synchronous>, transform_indices = @transform_4, window_bounds = array<i64: 40, 128>}, {transform_indices = @transform_5, window_bounds = array<i64: 1, 8, 128>}]} {
    %c0_i32 = arith.constant 0 : i32
    %0 = arith.cmpi eq, %arg0, %c0_i32 : i32
    %1 = arith.extui %0 : i1 to i32
    %c0_i32_0 = arith.constant 0 : i32
    %2 = arith.cmpi ne, %1, %c0_i32_0 : i32
    scf.if %2 {
      %c0_47 = arith.constant 0 : index
      %c0_48 = arith.constant 0 : index
      %95 = vector.load %arg3[%c0_47, %c0_48] : memref<8x32xf32, #tpu.memory_space<vmem>>, vector<8x32xf32>
      %c0_49 = arith.constant 0 : index
      %c0_50 = arith.constant 0 : index
      %96 = vector.load %arg7[%c0_49, %c0_50] : memref<8x32xf32, #tpu.memory_space<vmem>>, vector<8x32xf32>
      tpu.vector_store %arg7[%c0_49, %c0_50], %95 {strides = array<i32>} : memref<8x32xf32, #tpu.memory_space<vmem>>, vector<8x32xf32>,
    } else {
    }
    %c0 = arith.constant 0 : index
    %c0_1 = arith.constant 0 : index
    %3 = vector.load %arg4[%c0, %c0_1] : memref<144x128xf32, #tpu.memory_space<vmem>>, vector<16x32xf32>
    %c16 = arith.constant 16 : index
    %c0_2 = arith.constant 0 : index
    %4 = vector.load %arg4[%c16, %c0_2] : memref<144x128xf32, #tpu.memory_space<vmem>>, vector<32x96xf32>
    %c48 = arith.constant 48 : index
    %c0_3 = arith.constant 0 : index
    %5 = vector.load %arg4[%c48, %c0_3] : memref<144x128xf32, #tpu.memory_space<vmem>>, vector<32x96xf32>
    %c80 = arith.constant 80 : index
    %c0_4 = arith.constant 0 : index
    %6 = vector.load %arg4[%c80, %c0_4] : memref<144x128xf32, #tpu.memory_space<vmem>>, vector<32x33xf32>
    %c112 = arith.constant 112 : index
    %c0_5 = arith.constant 0 : index
    %7 = vector.load %arg4[%c112, %c0_5] : memref<144x128xf32, #tpu.memory_space<vmem>>, vector<32x4xf32>
    %c0_6 = arith.constant 0 : index
    %c0_7 = arith.constant 0 : index
    %8 = vector.load %arg5[%c0_6, %c0_7] : memref<40x128xf32, #tpu.memory_space<vmem>>, vector<8x32xf32>
    %c8 = arith.constant 8 : index
    %c0_8 = arith.constant 0 : index
    %9 = vector.load %arg5[%c8, %c0_8] : memref<40x128xf32, #tpu.memory_space<vmem>>, vector<8x96xf32>
    %c16_9 = arith.constant 16 : index
    %c0_10 = arith.constant 0 : index
    %10 = vector.load %arg5[%c16_9, %c0_10] : memref<40x128xf32, #tpu.memory_space<vmem>>, vector<8x96xf32>
    %c24 = arith.constant 24 : index
    %c0_11 = arith.constant 0 : index
    %11 = vector.load %arg5[%c24, %c0_11] : memref<40x128xf32, #tpu.memory_space<vmem>>, vector<8x33xf32>
    %c32 = arith.constant 32 : index
    %c0_12 = arith.constant 0 : index
    %12 = vector.load %arg5[%c32, %c0_12] : memref<40x128xf32, #tpu.memory_space<vmem>>, vector<8x4xf32>
    %c0_13 = arith.constant 0 : index
    %c0_14 = arith.constant 0 : index
    %c0_15 = arith.constant 0 : index
    %13 = vector.load %arg1[%c0_13, %c0_14, %c0_15] : memref<1x8x16xf32, #tpu.memory_space<vmem>>, vector<1x8x16xf32>
    %14 = vector.shape_cast %13 : vector<1x8x16xf32> to vector<8x16xf32>
    %c0_16 = arith.constant 0 : index
    %c0_17 = arith.constant 0 : index
    %15 = vector.load %arg7[%c0_16, %c0_17] : memref<8x32xf32, #tpu.memory_space<vmem>>, vector<8x32xf32>
    %c0_18 = arith.constant 0 : index
    %c0_19 = arith.constant 0 : index
    %c0_20 = arith.constant 0 : index
    %16 = vector.load %arg2[%c0_18, %c0_19, %c0_20] : memref<1x8x1xf32, #tpu.memory_space<vmem>>, vector<1x8x1xf32>
    %17 = vector.shape_cast %16 : vector<1x8x1xf32> to vector<8x1xf32>
    %18 = vector.broadcast %17 : vector<8x1xf32> to vector<8x32xf32>
    %19 = arith.mulf %15, %18 : vector<8x32xf32>
    %cst = arith.constant dense<0.000000e+00> : vector<8x32xf32>
    %20 = tpu.matmul %14, %3, %cst {dimension_numbers = #tpu.dot_dimension_numbers<[1], [0], [0], [1], [0, 0, 1, 1], [], []>, precision = #tpu.contract_precision<fp32>} : vector<8x16xf32>, vector<16x32xf32>, vector<8x32xf32> -> vector<8x32xf32>
    %21 = arith.addf %20, %8 : vector<8x32xf32>
    %22 = math.tanh %21 : vector<8x32xf32>
    %cst_21 = arith.constant dense<0.000000e+00> : vector<8x96xf32>
    %23 = tpu.matmul %22, %4, %cst_21 {dimension_numbers = #tpu.dot_dimension_numbers<[1], [0], [0], [1], [0, 0, 1, 1], [], []>, precision = #tpu.contract_precision<fp32>} : vector<8x32xf32>, vector<32x96xf32>, vector<8x96xf32> -> vector<8x96xf32>
    %24 = arith.addf %23, %9 : vector<8x96xf32>
    %cst_22 = arith.constant dense<0.000000e+00> : vector<8x96xf32>
    %25 = tpu.matmul %19, %5, %cst_22 {dimension_numbers = #tpu.dot_dimension_numbers<[1], [0], [0], [1], [0, 0, 1, 1], [], []>, precision = #tpu.contract_precision<fp32>} : vector<8x32xf32>, vector<32x96xf32>, vector<8x96xf32> -> vector<8x96xf32>
    %26 = arith.addf %25, %10 : vector<8x96xf32>
    %27 = vector.extract_strided_slice %24 {offsets = [0, 0], sizes = [8, 32], strides = [1, 1]} : vector<8x96xf32> to vector<8x32xf32>
    %28 = vector.extract_strided_slice %26 {offsets = [0, 0], sizes = [8, 32], strides = [1, 1]} : vector<8x96xf32> to vector<8x32xf32>
    %29 = arith.addf %27, %28 : vector<8x32xf32>
    %30 = arith.negf %29 : vector<8x32xf32>
    %31 = math.exp %30 : vector<8x32xf32>
    %cst_23 = arith.constant 1.000000e+00 : f32
    %32 = vector.broadcast %cst_23 : f32 to vector<8x32xf32>
    %33 = arith.addf %32, %31 : vector<8x32xf32>
    %34 = arith.divf %32, %33 : vector<8x32xf32>
    %35 = vector.extract_strided_slice %24 {offsets = [0, 32], sizes = [8, 32], strides = [1, 1]} : vector<8x96xf32> to vector<8x32xf32>
    %36 = vector.extract_strided_slice %26 {offsets = [0, 32], sizes = [8, 32], strides = [1, 1]} : vector<8x96xf32> to vector<8x32xf32>
    %37 = arith.addf %35, %36 : vector<8x32xf32>
    %38 = arith.negf %37 : vector<8x32xf32>
    %39 = math.exp %38 : vector<8x32xf32>
    %cst_24 = arith.constant 1.000000e+00 : f32
    %40 = vector.broadcast %cst_24 : f32 to vector<8x32xf32>
    %41 = arith.addf %40, %39 : vector<8x32xf32>
    %42 = arith.divf %40, %41 : vector<8x32xf32>
    %43 = vector.extract_strided_slice %24 {offsets = [0, 64], sizes = [8, 32], strides = [1, 1]} : vector<8x96xf32> to vector<8x32xf32>
    %44 = vector.extract_strided_slice %26 {offsets = [0, 64], sizes = [8, 32], strides = [1, 1]} : vector<8x96xf32> to vector<8x32xf32>
    %45 = arith.mulf %34, %44 : vector<8x32xf32>
    %46 = arith.addf %43, %45 : vector<8x32xf32>
    %47 = math.tanh %46 : vector<8x32xf32>
    %cst_25 = arith.constant 1.000000e+00 : f32
    %48 = vector.broadcast %cst_25 : f32 to vector<8x32xf32>
    %49 = arith.subf %48, %42 : vector<8x32xf32>
    %50 = arith.mulf %49, %47 : vector<8x32xf32>
    %51 = arith.mulf %42, %19 : vector<8x32xf32>
    %52 = arith.addf %50, %51 : vector<8x32xf32>
    %c0_26 = arith.constant 0 : index
    %c0_27 = arith.constant 0 : index
    %53 = vector.load %arg7[%c0_26, %c0_27] : memref<8x32xf32, #tpu.memory_space<vmem>>, vector<8x32xf32>
    tpu.vector_store %arg7[%c0_26, %c0_27], %52 {strides = array<i32>} : memref<8x32xf32, #tpu.memory_space<vmem>>, vector<8x32xf32>,
    %cst_28 = arith.constant dense<0.000000e+00> : vector<8x33xf32>
    %54 = tpu.matmul %52, %6, %cst_28 {dimension_numbers = #tpu.dot_dimension_numbers<[1], [0], [0], [1], [0, 0, 1, 1], [], []>, precision = #tpu.contract_precision<fp32>} : vector<8x32xf32>, vector<32x33xf32>, vector<8x33xf32> -> vector<8x33xf32>
    %55 = arith.addf %54, %11 : vector<8x33xf32>
    %56 = vector.extract_strided_slice %55 {offsets = [0, 0], sizes = [8, 32], strides = [1, 1]} : vector<8x33xf32> to vector<8x32xf32>
    %57 = math.tanh %56 : vector<8x32xf32>
    %58 = vector.extract_strided_slice %55 {offsets = [0, 32], sizes = [8, 1], strides = [1, 1]} : vector<8x33xf32> to vector<8x1xf32>
    %cst_29 = arith.constant dense<0.000000e+00> : vector<8x4xf32>
    %59 = tpu.matmul %57, %7, %cst_29 {dimension_numbers = #tpu.dot_dimension_numbers<[1], [0], [0], [1], [0, 0, 1, 1], [], []>, precision = #tpu.contract_precision<fp32>} : vector<8x32xf32>, vector<32x4xf32>, vector<8x4xf32> -> vector<8x4xf32>
    %60 = arith.addf %59, %12 : vector<8x4xf32>
    %cst_30 = arith.constant dense<0xFF800000> : vector<8xf32>
    %61 = vector.multi_reduction <maximumf>, %60, %cst_30 [1] : vector<8x4xf32> to vector<8xf32>
    %62 = vector.shape_cast %61 : vector<8xf32> to vector<8x1xf32>
    %63 = vector.broadcast %62 : vector<8x1xf32> to vector<8x4xf32>
    %64 = arith.subf %60, %63 : vector<8x4xf32>
    %65 = math.exp %64 : vector<8x4xf32>
    %cst_31 = arith.constant dense<0.000000e+00> : vector<8xf32>
    %66 = vector.multi_reduction <add>, %65, %cst_31 [1] : vector<8x4xf32> to vector<8xf32>
    %67 = vector.shape_cast %66 : vector<8xf32> to vector<8x1xf32>
    %68 = math.log %67 : vector<8x1xf32>
    %cst_32 = arith.constant 0.000000e+00 : f32
    %69 = vector.broadcast %cst_32 : f32 to vector<8x1xf32>
    %70 = arith.subf %69, %68 : vector<8x1xf32>
    %71 = tpu.iota {dimensions = array<i32: 1>} : vector<8x4xi32>
    %72 = vector.broadcast %62 : vector<8x1xf32> to vector<8x4xf32>
    %73 = arith.cmpf oeq, %60, %72 : vector<8x4xf32>
    %c4_i32 = arith.constant 4 : i32
    %74 = vector.broadcast %c4_i32 : i32 to vector<8x4xi32>
    %75 = arith.select %73, %71, %74 : vector<8x4xi1>, vector<8x4xi32>
    %cst_33 = arith.constant dense<2147483647> : vector<8xi32>
    %76 = vector.multi_reduction <minsi>, %75, %cst_33 [1] : vector<8x4xi32> to vector<8xi32>
    %77 = vector.shape_cast %76 : vector<8xi32> to vector<8x1xi32>
    %78 = arith.sitofp %77 : vector<8x1xi32> to vector<8x1xf32>
    %c0_34 = arith.constant 0 : index
    %c0_35 = arith.constant 0 : index
    %c0_36 = arith.constant 0 : index
    %79 = vector.load %arg6[%c0_34, %c0_35, %c0_36] : memref<1x8x128xf32, #tpu.memory_space<vmem>>, vector<1x8x32xf32>
    %80 = vector.shape_cast %79 : vector<1x8x32xf32> to vector<8x32xf32>
    %81 = vector.shape_cast %52 : vector<8x32xf32> to vector<1x8x32xf32>
    tpu.vector_store %arg6[%c0_34, %c0_35, %c0_36], %81 {strides = array<i32>} : memref<1x8x128xf32, #tpu.memory_space<vmem>>, vector<1x8x32xf32>,
    %c0_37 = arith.constant 0 : index
    %c0_38 = arith.constant 0 : index
    %c32_39 = arith.constant 32 : index
    %82 = vector.load %arg6[%c0_37, %c0_38, %c32_39] : memref<1x8x128xf32, #tpu.memory_space<vmem>>, vector<1x8x1xf32>
    %83 = vector.shape_cast %82 : vector<1x8x1xf32> to vector<8x1xf32>
    %84 = vector.shape_cast %58 : vector<8x1xf32> to vector<1x8x1xf32>
    tpu.vector_store %arg6[%c0_37, %c0_38, %c32_39], %84 {strides = array<i32>} : memref<1x8x128xf32, #tpu.memory_space<vmem>>, vector<1x8x1xf32>,
    %c0_40 = arith.constant 0 : index
    %c0_41 = arith.constant 0 : index
    %c33 = arith.constant 33 : index
    %85 = vector.load %arg6[%c0_40, %c0_41, %c33] : memref<1x8x128xf32, #tpu.memory_space<vmem>>, vector<1x8x1xf32>
    %86 = vector.shape_cast %85 : vector<1x8x1xf32> to vector<8x1xf32>
    %87 = vector.shape_cast %70 : vector<8x1xf32> to vector<1x8x1xf32>
    tpu.vector_store %arg6[%c0_40, %c0_41, %c33], %87 {strides = array<i32>} : memref<1x8x128xf32, #tpu.memory_space<vmem>>, vector<1x8x1xf32>,
    %c0_42 = arith.constant 0 : index
    %c0_43 = arith.constant 0 : index
    %c34 = arith.constant 34 : index
    %88 = vector.load %arg6[%c0_42, %c0_43, %c34] : memref<1x8x128xf32, #tpu.memory_space<vmem>>, vector<1x8x1xf32>
    %89 = vector.shape_cast %88 : vector<1x8x1xf32> to vector<8x1xf32>
    %90 = vector.shape_cast %78 : vector<8x1xf32> to vector<1x8x1xf32>
    tpu.vector_store %arg6[%c0_42, %c0_43, %c34], %90 {strides = array<i32>} : memref<1x8x128xf32, #tpu.memory_space<vmem>>, vector<1x8x1xf32>,
    %cst_44 = arith.constant 0.000000e+00 : f32
    %91 = vector.broadcast %cst_44 : f32 to vector<8x93xf32>
    %c0_45 = arith.constant 0 : index
    %c0_46 = arith.constant 0 : index
    %c35 = arith.constant 35 : index
    %92 = vector.load %arg6[%c0_45, %c0_46, %c35] : memref<1x8x128xf32, #tpu.memory_space<vmem>>, vector<1x8x93xf32>
    %93 = vector.shape_cast %92 : vector<1x8x93xf32> to vector<8x93xf32>
    %94 = vector.shape_cast %91 : vector<8x93xf32> to vector<1x8x93xf32>
    tpu.vector_store %arg6[%c0_45, %c0_46, %c35], %94 {strides = array<i32>} : memref<1x8x128xf32, #tpu.memory_space<vmem>>, vector<1x8x93xf32>,
    return
  }
  func.func @transform_0(%arg0: i32) -> (i32, i32, i32) {
    %c0_i32 = arith.constant 0 : i32
    %c0_i32_0 = arith.constant 0 : i32
    %c0_i32_1 = arith.constant 0 : i32
    return %arg0, %c0_i32, %c0_i32_0 : i32, i32, i32
  }
  func.func @transform_1(%arg0: i32) -> (i32, i32, i32) {
    %c0_i32 = arith.constant 0 : i32
    %c0_i32_0 = arith.constant 0 : i32
    %c0_i32_1 = arith.constant 0 : i32
    return %arg0, %c0_i32, %c0_i32_0 : i32, i32, i32
  }
  func.func @transform_2(%arg0: i32) -> (i32, i32) {
    %c0_i32 = arith.constant 0 : i32
    %c0_i32_0 = arith.constant 0 : i32
    %c0_i32_1 = arith.constant 0 : i32
    return %c0_i32, %c0_i32_0 : i32, i32
  }
  func.func @transform_3(%arg0: i32) -> (i32, i32) {
    %c0_i32 = arith.constant 0 : i32
    %c0_i32_0 = arith.constant 0 : i32
    %c0_i32_1 = arith.constant 0 : i32
    return %c0_i32, %c0_i32_0 : i32, i32
  }
  func.func @transform_4(%arg0: i32) -> (i32, i32) {
    %c0_i32 = arith.constant 0 : i32
    %c0_i32_0 = arith.constant 0 : i32
    %c0_i32_1 = arith.constant 0 : i32
    return %c0_i32, %c0_i32_0 : i32, i32
  }
  func.func @transform_5(%arg0: i32) -> (i32, i32, i32) {
    %c0_i32 = arith.constant 0 : i32
    %c0_i32_0 = arith.constant 0 : i32
    %c0_i32_1 = arith.constant 0 : i32
    return %arg0, %c0_i32, %c0_i32_0 : i32, i32, i32
  }
}

</mosaic_0001>

<llo_original>
// kernel: ac_act_rollout.1
$region0: #{ac_act_rollout.1}
  #allocation0 [shape = 'u32[]', space=smem, size = 0x4, offset = 0x4, fixed_abs, tag = 'smem constant byte address 0x4 - core index']
  #allocation1 [shape = 'u32[72,128]{1,0:T(1,128)}', space=vmem, size = 0x9000, scoped, tag = 'internal scratch']
  #allocation2 [shape = 'f32[8,32]{1,0:T(8,128)}', space=vmem, size = 0x1000, scoped, tag = 'scratch operand']
  %s0 = inlined_call_operand.vmem [shape: f32[8,8,16], index: 0, kind: input, shape index: {}]
  %s1 = inlined_call_operand.vmem [shape: f32[8,8,1], index: 1, kind: input, shape index: {}]
  %s2 = inlined_call_operand.vmem [shape: f32[8,32], index: 2, kind: input, shape index: {}]
  %s3 = inlined_call_operand.hbm [shape: f32[144,128], index: 3, kind: input, shape index: {}]
  %s4 = inlined_call_operand.hbm [shape: f32[40,128], index: 4, kind: input, shape index: {}]
  %s5 = inlined_call_operand.vmem [shape: f32[8,8,128], index: 5, kind: output, shape index: {}]
  %s6 = sld [smem:[#allocation0]]
  $region65: #{ac_act_rollout.1} parent=0
    _
  %s8 = ssub.s32 1, %s6
  %s9 = scalar_select 0, %s8, %s6
  $region1: #{ac_act_rollout.1} parent=0
    #allocation3 [shape = 'u8[73728]{0}', space=vmem, size = 0x12000, scoped, tag = 'input window, operand 3, single buffered']
    #allocation4 [shape = 's32[2]{0}', space=sflag, size = 0x8, scoped, tag = 'scoped memory for ac_act_rollout.1']
    #allocation5 [shape = 'u8[20480]{0}', space=vmem, size = 0x5000, scoped, tag = 'input window, operand 4, single buffered']
    #allocation6 [shape = 's32[1]{0}', space=sflag, size = 0x4, scoped, tag = 'scoped memory for ac_act_rollout.1']
    %10 = vsyncpa [#allocation4], 0
    %11 = vsyncpa [#allocation6], 0
    loop: start=0, step=1, limit=10
    $region2: #{ac_act_rollout.1} parent=1 // loop_pre_header
      _
    $region3: #{ac_act_rollout.1} parent=1 // loop_header
      %s13 = sphi 0, %s17
      %p14 = scmp.ge.s32.totalorder %s13, 10
      %s23 = sphi 0, %s25
      %s26 = sphi 0, %s23
      %s27 = sphi 0, %s26
      %s43 = sphi 0, %s27
      %s49 = sphi 0, %s51
      %s52 = sphi 0, %s49
      %s53 = sphi 0, %s52
      %s69 = sphi 0, %s53
      %s73 = sphi 0, %s73
      %s75 = sphi 0, %s73
      %s76 = sphi 0, %s75
      %s90 = sphi 0, %s76
      %s94 = sphi 0, %s94
      %s96 = sphi 0, %s94
      %s97 = sphi 0, %s96
      %s111 = sphi 0, %s97
      %s115 = sphi 0, %s115
      %s117 = sphi 0, %s115
      %s118 = sphi 0, %s117
      %s132 = sphi 0, %s118
      %s138 = sphi 0, %s140
      %s141 = sphi 0, %s138
      %s142 = sphi 0, %s141
      %s158 = sphi 0, %s142
    $region4: #{ac_act_rollout.1} parent=1 // loop_header_branch
      %16 = sbr.rel (%p14) target = $region8
    $region5: #{ac_act_rollout.1} parent=1 // loop_body
      %s18 = ssub.s32 %s13, 1
      %s19 = ssub.s32 %s13, 2
      %s20 = sadd.s32 %s13, 1
      %s21 = ssub.s32 %s13, %s20
      %p22 = scmp.eq.s32.totalorder %s21, 0
      %s24 = sadd.s32 %s23, 1
      %s25 = scalar_select %p22, %s23, %s24
      %p28 = pneg %p22
      %p29 = scmp.eq.s32.totalorder %s13, 7
      %p30 = por %p28, %p29
      %p31 = scmp.ne.s32.totalorder %s23, %s26
      %p32 = scmp.eq.s32.totalorder %s13, 0
      %p33 = por %p31, %p32
      %p34 = scmp.ne.s32.totalorder %s23, %s26
      %p35 = scmp.eq.s32.totalorder %s18, 7
      %p36 = por %p34, %p35
      %p37 = scmp.ne.s32.totalorder %s26, %s27
      %p38 = scmp.eq.s32.totalorder %s18, 0
      %p39 = por %p37, %p38
      %p40 = scmp.ne.s32.totalorder %s26, %s27
      %p41 = scmp.eq.s32.totalorder %s19, 7
      %p42 = por %p40, %p41
      %p44 = scmp.ne.s32.totalorder %s27, %s43
      %p45 = scmp.eq.s32.totalorder %s19, 0
      %p46 = por %p44, %p45
      %s47 = ssub.s32 %s13, %s20
      %p48 = scmp.eq.s32.totalorder %s47, 0
      %s50 = sadd.s32 %s49, 1
      %s51 = scalar_select %p48, %s49, %s50
      %p54 = pneg %p48
      %p55 = scmp.eq.s32.totalorder %s13, 7
      %p56 = por %p54, %p55
      %p57 = scmp.ne.s32.totalorder %s49, %s52
      %p58 = scmp.eq.s32.totalorder %s13, 0
      %p59 = por %p57, %p58
      %p60 = scmp.ne.s32.totalorder %s49, %s52
      %p61 = scmp.eq.s32.totalorder %s18, 7
      %p62 = por %p60, %p61
      %p63 = scmp.ne.s32.totalorder %s52, %s53
      %p64 = scmp.eq.s32.totalorder %s18, 0
      %p65 = por %p63, %p64
      %p66 = scmp.ne.s32.totalorder %s52, %s53
      %p67 = scmp.eq.s32.totalorder %s19, 7
      %p68 = por %p66, %p67
      %p70 = scmp.ne.s32.totalorder %s53, %s69
      %p71 = scmp.eq.s32.totalorder %s19, 0
      %p72 = por %p70, %p71
      %s74 = sadd.s32 %s73, 1
      %p77 = scmp.eq.s32.totalorder %s13, 7
      %p78 = scmp.ne.s32.totalorder %s73, %s75
      %p79 = scmp.eq.s32.totalorder %s13, 0
      %p80 = por %p78, %p79
      %p81 = scmp.ne.s32.totalorder %s73, %s75
      %p82 = scmp.eq.s32.totalorder %s18, 7
      %p83 = por %p81, %p82
      %p84 = scmp.ne.s32.totalorder %s75, %s76
      %p85 = scmp.eq.s32.totalorder %s18, 0
      %p86 = por %p84, %p85
      %p87 = scmp.ne.s32.totalorder %s75, %s76
      %p88 = scmp.eq.s32.totalorder %s19, 7
      %p89 = por %p87, %p88
      %p91 = scmp.ne.s32.totalorder %s76, %s90
      %p92 = scmp.eq.s32.totalorder %s19, 0
      %p93 = por %p91, %p92
      %s95 = sadd.s32 %s94, 1
      %p98 = scmp.eq.s32.totalorder %s13, 7
      %p99 = scmp.ne.s32.totalorder %s94, %s96
      %p100 = scmp.eq.s32.totalorder %s13, 0
      %p101 = por %p99, %p100
      %p102 = scmp.ne.s32.totalorder %s94, %s96
      %p103 = scmp.eq.s32.totalorder %s18, 7
      %p104 = por %p102, %p103
      %p105 = scmp.ne.s32.totalorder %s96, %s97
      %p106 = scmp.eq.s32.totalorder %s18, 0
      %p107 = por %p105, %p106
      %p108 = scmp.ne.s32.totalorder %s96, %s97
      %p109 = scmp.eq.s32.totalorder %s19, 7
      %p110 = por %p108, %p109
      %p112 = scmp.ne.s32.totalorder %s97, %s111
      %p113 = scmp.eq.s32.totalorder %s19, 0
      %p114 = por %p112, %p113
      %s116 = sadd.s32 %s115, 1
      %p119 = scmp.eq.s32.totalorder %s13, 7
      %p120 = scmp.ne.s32.totalorder %s115, %s117
      %p121 = scmp.eq.s32.totalorder %s13, 0
      %p122 = por %p120, %p121
      %p123 = scmp.ne.s32.totalorder %s115, %s117
      %p124 = scmp.eq.s32.totalorder %s18, 7
      %p125 = por %p123, %p124
      %p126 = scmp.ne.s32.totalorder %s117, %s118
      %p127 = scmp.eq.s32.totalorder %s18, 0
      %p128 = por %p126, %p127
      %p129 = scmp.ne.s32.totalorder %s117, %s118
      %p130 = scmp.eq.s32.totalorder %s19, 7
      %p131 = por %p129, %p130
      %p133 = scmp.ne.s32.totalorder %s118, %s132
      %p134 = scmp.eq.s32.totalorder %s19, 0
      %p135 = por %p133, %p134
      %s136 = ssub.s32 %s13, %s20
      %p137 = scmp.eq.s32.totalorder %s136, 0
      %s139 = sadd.s32 %s138, 1
      %s140 = scalar_select %p137, %s138, %s139
      %p143 = pneg %p137
      %p144 = scmp.eq.s32.totalorder %s13, 7
      %p145 = por %p143, %p144
      %p146 = scmp.ne.s32.totalorder %s138, %s141
      %p147 = scmp.eq.s32.totalorder %s13, 0
      %p148 = por %p146, %p147
      %p149 = scmp.ne.s32.totalorder %s138, %s141
      %p150 = scmp.eq.s32.totalorder %s18, 7
      %p151 = por %p149, %p150
      %p152 = scmp.ne.s32.totalorder %s141, %s142
      %p153 = scmp.eq.s32.totalorder %s18, 0
      %p154 = por %p152, %p153
      %p155 = scmp.ne.s32.totalorder %s141, %s142
      %p156 = scmp.eq.s32.totalorder %s19, 7
      %p157 = por %p155, %p156
      %p159 = scmp.ne.s32.totalorder %s142, %s158
      %p160 = scmp.eq.s32.totalorder %s19, 0
      %p161 = por %p159, %p160
      %p162 = scmp.le.s32.totalorder 1, %s13
      %p163 = scmp.lt.s32.totalorder %s13, 9
      %p164 = pnand %p162, %p163
      %p165 = pneg %p164
      // Predicated region
      $region9: #{ac_act_rollout.1} parent=5 // pred_check
        _
      $region10: #{ac_act_rollout.1} parent=5 // pred_check_branch
        %167 = sbr.rel (%p164) target = $region12
      $region11: #{ac_act_rollout.1} parent=5 // pred_region
        %s168 = ssub.s32 %s13, 1
        // Predicated region
        $region13: #{ac_act_rollout.1} parent=11 // pred_check
          %p169 = pneg %p86
        $region14: #{ac_act_rollout.1} parent=11 // pred_check_branch
          %171 = sbr.rel (%p169) target = $region16
        $region15: #{ac_act_rollout.1} parent=11 // pred_region
          _
        $region16: #{ac_act_rollout.1} parent=11 // pred_fallthru
          _
        // Predicated region
        $region17: #{ac_act_rollout.1} parent=11 // pred_check
          %p172 = pneg %p107
        $region18: #{ac_act_rollout.1} parent=11 // pred_check_branch
          %174 = sbr.rel (%p172) target = $region20
        $region19: #{ac_act_rollout.1} parent=11 // pred_region
          %176 = vsyncadd [#allocation4], 0
          %s177 = sshll.u32 %s3, 4
          %s178 = int_to_ptr.hbm [resolvable:$true] %s177
          %s179 = sshll.u32 [#allocation3], 4
          %s180 = int_to_ptr.vmem [resolvable:$true] %s179
          %185 = dma.hbm_to_vmem [thread:$0]  %s178, 2304, %s180, [#allocation4], 128, 128, 8
        $region20: #{ac_act_rollout.1} parent=11 // pred_fallthru
          _
        // Predicated region
        $region21: #{ac_act_rollout.1} parent=11 // pred_check
          %p186 = pneg %p128
        $region22: #{ac_act_rollout.1} parent=11 // pred_check_branch
          %188 = sbr.rel (%p186) target = $region24
        $region23: #{ac_act_rollout.1} parent=11 // pred_region
          %190 = vsyncadd [#allocation6], 0
          %s191 = sshll.u32 %s4, 4
          %s192 = int_to_ptr.hbm [resolvable:$true] %s191
          %s193 = sshll.u32 [#allocation5], 4
          %s194 = int_to_ptr.vmem [resolvable:$true] %s193
          %199 = dma.hbm_to_vmem [thread:$0]  %s192, 640, %s194, [#allocation6], 128, 128, 8
        $region24: #{ac_act_rollout.1} parent=11 // pred_fallthru
          _
      $region12: #{ac_act_rollout.1} parent=5 // pred_fallthru
        _
      %p200 = scmp.lt.s32.totalorder %s13, 8
      // Predicated region
      $region25: #{ac_act_rollout.1} parent=5 // pred_check
        %p201 = pneg %p200
      $region26: #{ac_act_rollout.1} parent=5 // pred_check_branch
        %203 = sbr.rel (%p201) target = $region28
      $region27: #{ac_act_rollout.1} parent=5 // pred_region
        // Predicated region
        $region29: #{ac_act_rollout.1} parent=27 // pred_check
          %p204 = pneg %p33
        $region30: #{ac_act_rollout.1} parent=27 // pred_check_branch
          %206 = sbr.rel (%p204) target = $region32
        $region31: #{ac_act_rollout.1} parent=27 // pred_region
          %p207 = scmp.lt.s32.totalorder %s13, 7
          %s208 = scalar_select %p207, %s13, 7
          %s209 = smul.addr %s208, 8
          %s210 = scalar_lea.vmem %s0, %s209
        $region32: #{ac_act_rollout.1} parent=27 // pred_fallthru
          _
        // Predicated region
        $region33: #{ac_act_rollout.1} parent=27 // pred_check
          %p211 = pneg %p59
        $region34: #{ac_act_rollout.1} parent=27 // pred_check_branch
          %213 = sbr.rel (%p211) target = $region36
        $region35: #{ac_act_rollout.1} parent=27 // pred_region
          %p214 = scmp.lt.s32.totalorder %s13, 7
          %s215 = scalar_select %p214, %s13, 7
          %s216 = smul.addr %s215, 8
          %s217 = scalar_lea.vmem %s1, %s216
        $region36: #{ac_act_rollout.1} parent=27 // pred_fallthru
          _
      $region28: #{ac_act_rollout.1} parent=5 // pred_fallthru
        _
      %p218 = scmp.le.s32.totalorder 1, %s13
      %p219 = scmp.lt.s32.totalorder %s13, 9
      %p220 = pnand %p218, %p219
      %p221 = pneg %p220
      // Predicated region
      $region37: #{ac_act_rollout.1} parent=5 // pred_check
        _
      $region38: #{ac_act_rollout.1} parent=5 // pred_check_branch
        %223 = sbr.rel (%p220) target = $region40
      $region39: #{ac_act_rollout.1} parent=5 // pred_region
        %s224 = ssub.s32 %s13, 1
        // Predicated region
        $region41: #{ac_act_rollout.1} parent=39 // pred_check
          %p225 = pneg %p107
        $region42: #{ac_act_rollout.1} parent=39 // pred_check_branch
          %227 = sbr.rel (%p225) target = $region44
        $region43: #{ac_act_rollout.1} parent=39 // pred_region
          %229 = dma.done [#allocation4], 2304
        $region44: #{ac_act_rollout.1} parent=39 // pred_fallthru
          _
        // Predicated region
        $region45: #{ac_act_rollout.1} parent=39 // pred_check
          %p230 = pneg %p128
        $region46: #{ac_act_rollout.1} parent=39 // pred_check_branch
          %232 = sbr.rel (%p230) target = $region48
        $region47: #{ac_act_rollout.1} parent=39 // pred_region
          %234 = dma.done [#allocation6], 640
        $region48: #{ac_act_rollout.1} parent=39 // pred_fallthru
          _
        %p235 = scmp.lt.s32.totalorder %s18, 7
        %s236 = scalar_select %p235, %s18, 7
        %s237 = smul.addr %s236, 8
        %s238 = scalar_lea.vmem %s0, %s237
        %p239 = pneg %p39
        %p240 = pneg %p36
        %p241 = scmp.lt.s32.totalorder %s18, 7
        %s242 = scalar_select %p241, %s18, 7
        %s243 = smul.addr %s242, 8
        %s244 = scalar_lea.vmem %s1, %s243
        %p245 = pneg %p65
        %p246 = pneg %p62
        %p247 = pneg %p86
        %p248 = pneg %p83
        %p249 = pneg %p107
        %p250 = pneg %p104
        %p251 = pneg %p128
        %p252 = pneg %p125
        %p253 = pneg %p154
        %p254 = pneg %p151
        %p255 = scmp.lt.s32.totalorder %s18, 7
        %s256 = scalar_select %p255, %s18, 7
        %s257 = smul.addr %s256, 8
        %s258 = scalar_lea.vmem %s5, %s257
        %p259 = scmp.lt.s32.totalorder %s18, 7
        %s260 = scalar_select %p259, %s18, 7
        %s261 = smul.addr %s260, 8
        %s262 = scalar_lea.vmem %s0, %s261
        %p263 = scmp.lt.s32.totalorder %s18, 7
        %s264 = scalar_select %p263, %s18, 7
        %s265 = smul.addr %s264, 8
        %s266 = scalar_lea.vmem %s1, %s265
        %p267 = scmp.lt.s32.totalorder %s18, 7
        %s268 = scalar_select %p267, %s18, 7
        %s269 = smul.addr %s268, 8
        %s270 = scalar_lea.vmem %s5, %s269
        %p271 = scmp.eq.s32.totalorder %s18, 0
        // Predicated region
        $region49: #{ac_act_rollout.1} parent=39 // pred_check
          %p272 = pneg %p271
        $region50: #{ac_act_rollout.1} parent=39 // pred_check_branch
          %274 = sbr.rel (%p272) target = $region52
        $region51: #{ac_act_rollout.1} parent=39 // pred_region
          %v275 = vld [vmem:[%s2] sm:$0xff]
          %vm276 = vcmask 261120
          %277 = vst.msk [vmem:[#allocation2] sm:$0xff] %vm276, %v275
        $region52: #{ac_act_rollout.1} parent=39 // pred_fallthru
          _
        %v278 = vld [vmem:[#allocation3] sm:$0xff]
        %v279 = vld [vmem:[#allocation3 + $0x8] sm:$0xff]
        %v280 = vld [vmem:[#allocation3 + $0x10] sm:$0xff]
        %v281 = vld [vmem:[#allocation3 + $0x18] sm:$0xff]
        %v282 = vld [vmem:[#allocation3 + $0x20] sm:$0xff]
        %v283 = vld [vmem:[#allocation3 + $0x28] sm:$0xff]
        %v284 = vld [vmem:[#allocation3 + $0x30] sm:$0xff]
        %v285 = vld [vmem:[#allocation3 + $0x38] sm:$0xff]
        %v286 = vld [vmem:[#allocation3 + $0x40] sm:$0xff]
        %v287 = vld [vmem:[#allocation3 + $0x48] sm:$0xff]
        %v288 = vld [vmem:[#allocation3 + $0x50] sm:$0xff]
        %v289 = vld [vmem:[#allocation3 + $0x58] sm:$0xff]
        %v290 = vld [vmem:[#allocation3 + $0x60] sm:$0xff]
        %v291 = vld [vmem:[#allocation3 + $0x68] sm:$0xff]
        %v292 = vld [vmem:[#allocation3 + $0x70] sm:$0xff]
        %v293 = vld [vmem:[#allocation3 + $0x78] sm:$0xff]
        %v294 = vld [vmem:[#allocation3 + $0x80] sm:$0xff]
        %v295 = vld [vmem:[#allocation3 + $0x88] sm:$0xff]
        %v296 = vld [vmem:[#allocation5] sm:$0xff]
        %v297 = vld [vmem:[#allocation5 + $0x8] sm:$0xff]
        %v298 = vld [vmem:[#allocation5 + $0x10] sm:$0xff]
        %v299 = vld [vmem:[#allocation5 + $0x18] sm:$0xff]
        %v300 = vld [vmem:[#allocation5 + $0x20] sm:$0xff]
        %v301 = vld [vmem:[%s262] sm:$0xff]
        %v302 = vld [vmem:[#allocation2] sm:$0xff]
        %v303 = vld [vmem:[%s266] sm:$0xff]
        %305 = vset.pattern.permute.xlu0 0
        %306 = vperm.xlu0 %305, %v303
        %v307 = vpop.permute.xlu0 %306
        %v309 = vmul.f32 %v302, %v307
        %vm310 = vcmask 130048
        %v312 = vsel %vm310, %v301, 0
        %314 = vmatpush.msra.mxu0 0.0
        %315 = vmatpush.msra.mxu0 0.0
        %316 = vmatpush.msra.mxu0 0.0
        %317 = vmatpush.msra.mxu0 0.0
        %318 = vmatpush.msra.mxu0 0.0
        %319 = vmatpush.msra.mxu0 0.0
        %320 = vmatpush.msra.mxu0 0.0
        %321 = vmatpush.msra.mxu0 0.0
        %322 = vmatpush.msra.mxu0 0.0
        %323 = vmatpush.msra.mxu0 0.0
        %324 = vmatpush.msra.mxu0 0.0
        %325 = vmatpush.msra.mxu0 0.0
        %326 = vmatpush.msra.mxu0 0.0
        %327 = vmatpush.msra.mxu0 0.0
        %v328 = vand.u32 %v279, 4294901760
        %329 = vmatpush.msra.mxu0 %v328
        %v330 = vand.u32 %v278, 4294901760
        %331 = vmatpush.msra.mxu0 %v330
        %v332 = vand.u32 %v312, 4294901760
        %v333 = vsub.f32 %v312, %v332
        %v334 = vand.u32 %v333, 4294901760
        %v335 = vsub.f32 %v333, %v334
        %v336 = vand.u32 %v335, 4294901760
        %337 = vmatmul.f32.gmra.mxu0 %v336
        %v338 = vpop.f32.mrf.mxu0
        %v339 = vadd.f32 %v296, %v338
        %340 = vdwg.mxu0
        %341 = vmatpush.msra.mxu0 0.0
        %342 = vmatpush.msra.mxu0 0.0
        %343 = vmatpush.msra.mxu0 0.0
        %344 = vmatpush.msra.mxu0 0.0
        %345 = vmatpush.msra.mxu0 0.0
        %346 = vmatpush.msra.mxu0 0.0
        %347 = vmatpush.msra.mxu0 0.0
        %348 = vmatpush.msra.mxu0 0.0
        %349 = vmatpush.msra.mxu0 0.0
        %350 = vmatpush.msra.mxu0 0.0
        %351 = vmatpush.msra.mxu0 0.0
        %352 = vmatpush.msra.mxu0 0.0
        %353 = vmatpush.msra.mxu0 0.0
        %354 = vmatpush.msra.mxu0 0.0
        %v355 = vand.u32 %v279, 4294901760
        %v356 = vsub.f32 %v279, %v355
        %v357 = vand.u32 %v356, 4294901760
        %v358 = vsub.f32 %v356, %v357
        %v359 = vand.u32 %v358, 4294901760
        %360 = vmatpush.msra.mxu0 %v359
        %v361 = vand.u32 %v278, 4294901760
        %v362 = vsub.f32 %v278, %v361
        %v363 = vand.u32 %v362, 4294901760
        %v364 = vsub.f32 %v362, %v363
        %v365 = vand.u32 %v364, 4294901760
        %366 = vmatpush.msra.mxu0 %v365
        %v367 = vand.u32 %v312, 4294901760
        %368 = vmatmul.f32.gmra.mxu0 %v367
        %v369 = vpop.f32.mrf.mxu0
        %v370 = vadd.f32 %v339, %v369
        %371 = vdwg.mxu0
        %372 = vmatpush.msra.mxu0 0.0
        %373 = vmatpush.msra.mxu0 0.0
        %374 = vmatpush.msra.mxu0 0.0
        %375 = vmatpush.msra.mxu0 0.0
        %376 = vmatpush.msra.mxu0 0.0
        %377 = vmatpush.msra.mxu0 0.0
        %378 = vmatpush.msra.mxu0 0.0
        %379 = vmatpush.msra.mxu0 0.0
        %380 = vmatpush.msra.mxu0 0.0
        %381 = vmatpush.msra.mxu0 0.0
        %382 = vmatpush.msra.mxu0 0.0
        %383 = vmatpush.msra.mxu0 0.0
        %384 = vmatpush.msra.mxu0 0.0
        %385 = vmatpush.msra.mxu0 0.0
        %v386 = vand.u32 %v279, 4294901760
        %v387 = vsub.f32 %v279, %v386
        %388 = vmatpush.msra.mxu0 %v387
        %v389 = vand.u32 %v278, 4294901760
        %v390 = vsub.f32 %v278, %v389
        %391 = vmatpush.msra.mxu0 %v390
        %v392 = vand.u32 %v312, 4294901760
        %v393 = vsub.f32 %v312, %v392
        %394 = vmatmul.f32.gmra.mxu0 %v393
        %v395 = vpop.f32.mrf.mxu0
        %v396 = vadd.f32 %v370, %v395
        %397 = vdwg.mxu0
        %398 = vmatpush.msra.mxu0 0.0
        %399 = vmatpush.msra.mxu0 0.0
        %400 = vmatpush.msra.mxu0 0.0
        %401 = vmatpush.msra.mxu0 0.0
        %402 = vmatpush.msra.mxu0 0.0
        %403 = vmatpush.msra.mxu0 0.0
        %404 = vmatpush.msra.mxu0 0.0
        %405 = vmatpush.msra.mxu0 0.0
        %406 = vmatpush.msra.mxu0 0.0
        %407 = vmatpush.msra.mxu0 0.0
        %408 = vmatpush.msra.mxu0 0.0
        %409 = vmatpush.msra.mxu0 0.0
        %410 = vmatpush.msra.mxu0 0.0
        %411 = vmatpush.msra.mxu0 0.0
        %v412 = vand.u32 %v279, 4294901760
        %413 = vmatpush.msra.mxu0 %v412
        %v414 = vand.u32 %v278, 4294901760
        %415 = vmatpush.msra.mxu0 %v414
        %v416 = vand.u32 %v312, 4294901760
        %v417 = vsub.f32 %v312, %v416
        %v418 = vand.u32 %v417, 4294901760
        %419 = vmatmul.f32.gmra.mxu0 %v418
        %v420 = vpop.f32.mrf.mxu0
        %v421 = vadd.f32 %v396, %v420
        %422 = vdwg.mxu0
        %423 = vmatpush.msra.mxu0 0.0
        %424 = vmatpush.msra.mxu0 0.0
        %425 = vmatpush.msra.mxu0 0.0
        %426 = vmatpush.msra.mxu0 0.0
        %427 = vmatpush.msra.mxu0 0.0
        %428 = vmatpush.msra.mxu0 0.0
        %429 = vmatpush.msra.mxu0 0.0
        %430 = vmatpush.msra.mxu0 0.0
        %431 = vmatpush.msra.mxu0 0.0
        %432 = vmatpush.msra.mxu0 0.0
        %433 = vmatpush.msra.mxu0 0.0
        %434 = vmatpush.msra.mxu0 0.0
        %435 = vmatpush.msra.mxu0 0.0
        %436 = vmatpush.msra.mxu0 0.0
        %v437 = vand.u32 %v279, 4294901760
        %v438 = vsub.f32 %v279, %v437
        %v439 = vand.u32 %v438, 4294901760
        %440 = vmatpush.msra.mxu0 %v439
        %v441 = vand.u32 %v278, 4294901760
        %v442 = vsub.f32 %v278, %v441
        %v443 = vand.u32 %v442, 4294901760
        %444 = vmatpush.msra.mxu0 %v443
        %v445 = vand.u32 %v312, 4294901760
        %446 = vmatmul.f32.gmra.mxu0 %v445
        %v447 = vpop.f32.mrf.mxu0
        %v448 = vadd.f32 %v421, %v447
        %449 = vdwg.mxu0
        %450 = vmatpush.msra.mxu0 0.0
        %451 = vmatpush.msra.mxu0 0.0
        %452 = vmatpush.msra.mxu0 0.0
        %453 = vmatpush.msra.mxu0 0.0
        %454 = vmatpush.msra.mxu0 0.0
        %455 = vmatpush.msra.mxu0 0.0
        %456 = vmatpush.msra.mxu0 0.0
        %457 = vmatpush.msra.mxu0 0.0
        %458 = vmatpush.msra.mxu0 0.0
        %459 = vmatpush.msra.mxu0 0.0
        %460 = vmatpush.msra.mxu0 0.0
        %461 = vmatpush.msra.mxu0 0.0
        %462 = vmatpush.msra.mxu0 0.0
        %463 = vmatpush.msra.mxu0 0.0
        %v464 = vand.u32 %v279, 4294901760
        %465 = vmatpush.msra.mxu0 %v464
        %v466 = vand.u32 %v278, 4294901760
        %467 = vmatpush.msra.mxu0 %v466
        %v468 = vand.u32 %v312, 4294901760
        %469 = vmatmul.f32.gmra.mxu0 %v468
        %v470 = vpop.f32.mrf.mxu0
        %v471 = vadd.f32 %v448, %v470
        %472 = vdwg.mxu0
        %v473 = vtanh.pop %v471
        %vm474 = vcmask 261120
        %v476 = vsel %vm474, %v473, 0
        %478 = vmatpush.msra.mxu0 0.0
        %479 = vmatpush.msra.mxu0 0.0
        %480 = vmatpush.msra.mxu0 0.0
        %481 = vmatpush.msra.mxu0 0.0
        %482 = vmatpush.msra.mxu0 0.0
        %483 = vmatpush.msra.mxu0 0.0
        %484 = vmatpush.msra.mxu0 0.0
        %485 = vmatpush.msra.mxu0 0.0
        %486 = vmatpush.msra.mxu0 0.0
        %487 = vmatpush.msra.mxu0 0.0
        %488 = vmatpush.msra.mxu0 0.0
        %489 = vmatpush.msra.mxu0 0.0
        %v490 = vand.u32 %v283, 4294901760
        %491 = vmatpush.msra.mxu0 %v490
        %v492 = vand.u32 %v282, 4294901760
        %493 = vmatpush.msra.mxu0 %v492
        %v494 = vand.u32 %v281, 4294901760
        %495 = vmatpush.msra.mxu0 %v494
        %v496 = vand.u32 %v280, 4294901760
        %497 = vmatpush.msra.mxu0 %v496
        %v498 = vand.u32 %v476, 4294901760
        %v499 = vsub.f32 %v476, %v498
        %v500 = vand.u32 %v499, 4294901760
        %v501 = vsub.f32 %v499, %v500
        %v502 = vand.u32 %v501, 4294901760
        %503 = vmatmul.f32.gmra.mxu0 %v502
        %v504 = vpop.f32.mrf.mxu0
        %v505 = vadd.f32 %v297, %v504
        %506 = vdwg.mxu0
        %507 = vmatpush.msra.mxu0 0.0
        %508 = vmatpush.msra.mxu0 0.0
        %509 = vmatpush.msra.mxu0 0.0
        %510 = vmatpush.msra.mxu0 0.0
        %511 = vmatpush.msra.mxu0 0.0
        %512 = vmatpush.msra.mxu0 0.0
        %513 = vmatpush.msra.mxu0 0.0
        %514 = vmatpush.msra.mxu0 0.0
        %515 = vmatpush.msra.mxu0 0.0
        %516 = vmatpush.msra.mxu0 0.0
        %517 = vmatpush.msra.mxu0 0.0
        %518 = vmatpush.msra.mxu0 0.0
        %v519 = vand.u32 %v283, 4294901760
        %v520 = vsub.f32 %v283, %v519
        %v521 = vand.u32 %v520, 4294901760
        %v522 = vsub.f32 %v520, %v521
        %v523 = vand.u32 %v522, 4294901760
        %524 = vmatpush.msra.mxu0 %v523
        %v525 = vand.u32 %v282, 4294901760
        %v526 = vsub.f32 %v282, %v525
        %v527 = vand.u32 %v526, 4294901760
        %v528 = vsub.f32 %v526, %v527
        %v529 = vand.u32 %v528, 4294901760
        %530 = vmatpush.msra.mxu0 %v529
        %v531 = vand.u32 %v281, 4294901760
        %v532 = vsub.f32 %v281, %v531
        %v533 = vand.u32 %v532, 4294901760
        %v534 = vsub.f32 %v532, %v533
        %v535 = vand.u32 %v534, 4294901760
        %536 = vmatpush.msra.mxu0 %v535
        %v537 = vand.u32 %v280, 4294901760
        %v538 = vsub.f32 %v280, %v537
        %v539 = vand.u32 %v538, 4294901760
        %v540 = vsub.f32 %v538, %v539
        %v541 = vand.u32 %v540, 4294901760
        %542 = vmatpush.msra.mxu0 %v541
        %v543 = vand.u32 %v476, 4294901760
        %544 = vmatmul.f32.gmra.mxu0 %v543
        %v545 = vpop.f32.mrf.mxu0
        %v546 = vadd.f32 %v505, %v545
        %547 = vdwg.mxu0
        %548 = vmatpush.msra.mxu0 0.0
        %549 = vmatpush.msra.mxu0 0.0
        %550 = vmatpush.msra.mxu0 0.0
        %551 = vmatpush.msra.mxu0 0.0
        %552 = vmatpush.msra.mxu0 0.0
        %553 = vmatpush.msra.mxu0 0.0
        %554 = vmatpush.msra.mxu0 0.0
        %555 = vmatpush.msra.mxu0 0.0
        %556 = vmatpush.msra.mxu0 0.0
        %557 = vmatpush.msra.mxu0 0.0
        %558 = vmatpush.msra.mxu0 0.0
        %559 = vmatpush.msra.mxu0 0.0
        %v560 = vand.u32 %v283, 4294901760
        %v561 = vsub.f32 %v283, %v560
        %562 = vmatpush.msra.mxu0 %v561
        %v563 = vand.u32 %v282, 4294901760
        %v564 = vsub.f32 %v282, %v563
        %565 = vmatpush.msra.mxu0 %v564
        %v566 = vand.u32 %v281, 4294901760
        %v567 = vsub.f32 %v281, %v566
        %568 = vmatpush.msra.mxu0 %v567
        %v569 = vand.u32 %v280, 4294901760
        %v570 = vsub.f32 %v280, %v569
        %571 = vmatpush.msra.mxu0 %v570
        %v572 = vand.u32 %v476, 4294901760
        %v573 = vsub.f32 %v476, %v572
        %574 = vmatmul.f32.gmra.mxu0 %v573
        %v575 = vpop.f32.mrf.mxu0
        %v576 = vadd.f32 %v546, %v575
        %577 = vdwg.mxu0
        %578 = vmatpush.msra.mxu0 0.0
        %579 = vmatpush.msra.mxu0 0.0
        %580 = vmatpush.msra.mxu0 0.0
        %581 = vmatpush.msra.mxu0 0.0
        %582 = vmatpush.msra.mxu0 0.0
        %583 = vmatpush.msra.mxu0 0.0
        %584 = vmatpush.msra.mxu0 0.0
        %585 = vmatpush.msra.mxu0 0.0
        %586 = vmatpush.msra.mxu0 0.0
        %587 = vmatpush.msra.mxu0 0.0
        %588 = vmatpush.msra.mxu0 0.0
        %589 = vmatpush.msra.mxu0 0.0
        %v590 = vand.u32 %v283, 4294901760
        %591 = vmatpush.msra.mxu0 %v590
        %v592 = vand.u32 %v282, 4294901760
        %593 = vmatpush.msra.mxu0 %v592
        %v594 = vand.u32 %v281, 4294901760
        %595 = vmatpush.msra.mxu0 %v594
        %v596 = vand.u32 %v280, 4294901760
        %597 = vmatpush.msra.mxu0 %v596
        %v598 = vand.u32 %v476, 4294901760
        %v599 = vsub.f32 %v476, %v598
        %v600 = vand.u32 %v599, 4294901760
        %601 = vmatmul.f32.gmra.mxu0 %v600
        %v602 = vpop.f32.mrf.mxu0
        %v603 = vadd.f32 %v576, %v602
        %604 = vdwg.mxu0
        %605 = vmatpush.msra.mxu0 0.0
        %606 = vmatpush.msra.mxu0 0.0
        %607 = vmatpush.msra.mxu0 0.0
        %608 = vmatpush.msra.mxu0 0.0
        %609 = vmatpush.msra.mxu0 0.0
        %610 = vmatpush.msra.mxu0 0.0
        %611 = vmatpush.msra.mxu0 0.0
        %612 = vmatpush.msra.mxu0 0.0
        %613 = vmatpush.msra.mxu0 0.0
        %614 = vmatpush.msra.mxu0 0.0
        %615 = vmatpush.msra.mxu0 0.0
        %616 = vmatpush.msra.mxu0 0.0
        %v617 = vand.u32 %v283, 4294901760
        %v618 = vsub.f32 %v283, %v617
        %v619 = vand.u32 %v618, 4294901760
        %620 = vmatpush.msra.mxu0 %v619
        %v621 = vand.u32 %v282, 4294901760
        %v622 = vsub.f32 %v282, %v621
        %v623 = vand.u32 %v622, 4294901760
        %624 = vmatpush.msra.mxu0 %v623
        %v625 = vand.u32 %v281, 4294901760
        %v626 = vsub.f32 %v281, %v625
        %v627 = vand.u32 %v626, 4294901760
        %628 = vmatpush.msra.mxu0 %v627
        %v629 = vand.u32 %v280, 4294901760
        %v630 = vsub.f32 %v280, %v629
        %v631 = vand.u32 %v630, 4294901760
        %632 = vmatpush.msra.mxu0 %v631
        %v633 = vand.u32 %v476, 4294901760
        %634 = vmatmul.f32.gmra.mxu0 %v633
        %v635 = vpop.f32.mrf.mxu0
        %v636 = vadd.f32 %v603, %v635
        %637 = vdwg.mxu0
        %638 = vmatpush.msra.mxu0 0.0
        %639 = vmatpush.msra.mxu0 0.0
        %640 = vmatpush.msra.mxu0 0.0
        %641 = vmatpush.msra.mxu0 0.0
        %642 = vmatpush.msra.mxu0 0.0
        %643 = vmatpush.msra.mxu0 0.0
        %644 = vmatpush.msra.mxu0 0.0
        %645 = vmatpush.msra.mxu0 0.0
        %646 = vmatpush.msra.mxu0 0.0
        %647 = vmatpush.msra.mxu0 0.0
        %648 = vmatpush.msra.mxu0 0.0
        %649 = vmatpush.msra.mxu0 0.0
        %v650 = vand.u32 %v283, 4294901760
        %651 = vmatpush.msra.mxu0 %v650
        %v652 = vand.u32 %v282, 4294901760
        %653 = vmatpush.msra.mxu0 %v652
        %v654 = vand.u32 %v281, 4294901760
        %655 = vmatpush.msra.mxu0 %v654
        %v656 = vand.u32 %v280, 4294901760
        %657 = vmatpush.msra.mxu0 %v656
        %v658 = vand.u32 %v476, 4294901760
        %659 = vmatmul.f32.gmra.mxu0 %v658
        %v660 = vpop.f32.mrf.mxu0
        %v661 = vadd.f32 %v636, %v660
        %662 = vdwg.mxu0
        %v664 = vsel %vm474, %v309, 0
        %666 = vmatpush.msra.mxu0 0.0
        %667 = vmatpush.msra.mxu0 0.0
        %668 = vmatpush.msra.mxu0 0.0
        %669 = vmatpush.msra.mxu0 0.0
        %670 = vmatpush.msra.mxu0 0.0
        %671 = vmatpush.msra.mxu0 0.0
        %672 = vmatpush.msra.mxu0 0.0
        %673 = vmatpush.msra.mxu0 0.0
        %674 = vmatpush.msra.mxu0 0.0
        %675 = vmatpush.msra.mxu0 0.0
        %676 = vmatpush.msra.mxu0 0.0
        %677 = vmatpush.msra.mxu0 0.0
        %v678 = vand.u32 %v287, 4294901760
        %679 = vmatpush.msra.mxu0 %v678
        %v680 = vand.u32 %v286, 4294901760
        %681 = vmatpush.msra.mxu0 %v680
        %v682 = vand.u32 %v285, 4294901760
        %683 = vmatpush.msra.mxu0 %v682
        %v684 = vand.u32 %v284, 4294901760
        %685 = vmatpush.msra.mxu0 %v684
        %v686 = vand.u32 %v664, 4294901760
        %v687 = vsub.f32 %v664, %v686
        %v688 = vand.u32 %v687, 4294901760
        %v689 = vsub.f32 %v687, %v688
        %v690 = vand.u32 %v689, 4294901760
        %691 = vmatmul.f32.gmra.mxu0 %v690
        %v692 = vpop.f32.mrf.mxu0
        %v693 = vadd.f32 %v298, %v692
        %694 = vdwg.mxu0
        %695 = vmatpush.msra.mxu0 0.0
        %696 = vmatpush.msra.mxu0 0.0
        %697 = vmatpush.msra.mxu0 0.0
        %698 = vmatpush.msra.mxu0 0.0
        %699 = vmatpush.msra.mxu0 0.0
        %700 = vmatpush.msra.mxu0 0.0
        %701 = vmatpush.msra.mxu0 0.0
        %702 = vmatpush.msra.mxu0 0.0
        %703 = vmatpush.msra.mxu0 0.0
        %704 = vmatpush.msra.mxu0 0.0
        %705 = vmatpush.msra.mxu0 0.0
        %706 = vmatpush.msra.mxu0 0.0
        %v707 = vand.u32 %v287, 4294901760
        %v708 = vsub.f32 %v287, %v707
        %v709 = vand.u32 %v708, 4294901760
        %v710 = vsub.f32 %v708, %v709
        %v711 = vand.u32 %v710, 4294901760
        %712 = vmatpush.msra.mxu0 %v711
        %v713 = vand.u32 %v286, 4294901760
        %v714 = vsub.f32 %v286, %v713
        %v715 = vand.u32 %v714, 4294901760
        %v716 = vsub.f32 %v714, %v715
        %v717 = vand.u32 %v716, 4294901760
        %718 = vmatpush.msra.mxu0 %v717
        %v719 = vand.u32 %v285, 4294901760
        %v720 = vsub.f32 %v285, %v719
        %v721 = vand.u32 %v720, 4294901760
        %v722 = vsub.f32 %v720, %v721
        %v723 = vand.u32 %v722, 4294901760
        %724 = vmatpush.msra.mxu0 %v723
        %v725 = vand.u32 %v284, 4294901760
        %v726 = vsub.f32 %v284, %v725
        %v727 = vand.u32 %v726, 4294901760
        %v728 = vsub.f32 %v726, %v727
        %v729 = vand.u32 %v728, 4294901760
        %730 = vmatpush.msra.mxu0 %v729
        %v731 = vand.u32 %v664, 4294901760
        %732 = vmatmul.f32.gmra.mxu0 %v731
        %v733 = vpop.f32.mrf.mxu0
        %v734 = vadd.f32 %v693, %v733
        %735 = vdwg.mxu0
        %736 = vmatpush.msra.mxu0 0.0
        %737 = vmatpush.msra.mxu0 0.0
        %738 = vmatpush.msra.mxu0 0.0
        %739 = vmatpush.msra.mxu0 0.0
        %740 = vmatpush.msra.mxu0 0.0
        %741 = vmatpush.msra.mxu0 0.0
        %742 = vmatpush.msra.mxu0 0.0
        %743 = vmatpush.msra.mxu0 0.0
        %744 = vmatpush.msra.mxu0 0.0
        %745 = vmatpush.msra.mxu0 0.0
        %746 = vmatpush.msra.mxu0 0.0
        %747 = vmatpush.msra.mxu0 0.0
        %v748 = vand.u32 %v287, 4294901760
        %v749 = vsub.f32 %v287, %v748
        %750 = vmatpush.msra.mxu0 %v749
        %v751 = vand.u32 %v286, 4294901760
        %v752 = vsub.f32 %v286, %v751
        %753 = vmatpush.msra.mxu0 %v752
        %v754 = vand.u32 %v285, 4294901760
        %v755 = vsub.f32 %v285, %v754
        %756 = vmatpush.msra.mxu0 %v755
        %v757 = vand.u32 %v284, 4294901760
        %v758 = vsub.f32 %v284, %v757
        %759 = vmatpush.msra.mxu0 %v758
        %v760 = vand.u32 %v664, 4294901760
        %v761 = vsub.f32 %v664, %v760
        %762 = vmatmul.f32.gmra.mxu0 %v761
        %v763 = vpop.f32.mrf.mxu0
        %v764 = vadd.f32 %v734, %v763
        %765 = vdwg.mxu0
        %766 = vmatpush.msra.mxu0 0.0
        %767 = vmatpush.msra.mxu0 0.0
        %768 = vmatpush.msra.mxu0 0.0
        %769 = vmatpush.msra.mxu0 0.0
        %770 = vmatpush.msra.mxu0 0.0
        %771 = vmatpush.msra.mxu0 0.0
        %772 = vmatpush.msra.mxu0 0.0
        %773 = vmatpush.msra.mxu0 0.0
        %774 = vmatpush.msra.mxu0 0.0
        %775 = vmatpush.msra.mxu0 0.0
        %776 = vmatpush.msra.mxu0 0.0
        %777 = vmatpush.msra.mxu0 0.0
        %v778 = vand.u32 %v287, 4294901760
        %779 = vmatpush.msra.mxu0 %v778
        %v780 = vand.u32 %v286, 4294901760
        %781 = vmatpush.msra.mxu0 %v780
        %v782 = vand.u32 %v285, 4294901760
        %783 = vmatpush.msra.mxu0 %v782
        %v784 = vand.u32 %v284, 4294901760
        %785 = vmatpush.msra.mxu0 %v784
        %v786 = vand.u32 %v664, 4294901760
        %v787 = vsub.f32 %v664, %v786
        %v788 = vand.u32 %v787, 4294901760
        %789 = vmatmul.f32.gmra.mxu0 %v788
        %v790 = vpop.f32.mrf.mxu0
        %v791 = vadd.f32 %v764, %v790
        %792 = vdwg.mxu0
        %793 = vmatpush.msra.mxu0 0.0
        %794 = vmatpush.msra.mxu0 0.0
        %795 = vmatpush.msra.mxu0 0.0
        %796 = vmatpush.msra.mxu0 0.0
        %797 = vmatpush.msra.mxu0 0.0
        %798 = vmatpush.msra.mxu0 0.0
        %799 = vmatpush.msra.mxu0 0.0
        %800 = vmatpush.msra.mxu0 0.0
        %801 = vmatpush.msra.mxu0 0.0
        %802 = vmatpush.msra.mxu0 0.0
        %803 = vmatpush.msra.mxu0 0.0
        %804 = vmatpush.msra.mxu0 0.0
        %v805 = vand.u32 %v287, 4294901760
        %v806 = vsub.f32 %v287, %v805
        %v807 = vand.u32 %v806, 4294901760
        %808 = vmatpush.msra.mxu0 %v807
        %v809 = vand.u32 %v286, 4294901760
        %v810 = vsub.f32 %v286, %v809
        %v811 = vand.u32 %v810, 4294901760
        %812 = vmatpush.msra.mxu0 %v811
        %v813 = vand.u32 %v285, 4294901760
        %v814 = vsub.f32 %v285, %v813
        %v815 = vand.u32 %v814, 4294901760
        %816 = vmatpush.msra.mxu0 %v815
        %v817 = vand.u32 %v284, 4294901760
        %v818 = vsub.f32 %v284, %v817
        %v819 = vand.u32 %v818, 4294901760
        %820 = vmatpush.msra.mxu0 %v819
        %v821 = vand.u32 %v664, 4294901760
        %822 = vmatmul.f32.gmra.mxu0 %v821
        %v823 = vpop.f32.mrf.mxu0
        %v824 = vadd.f32 %v791, %v823
        %825 = vdwg.mxu0
        %826 = vmatpush.msra.mxu0 0.0
        %827 = vmatpush.msra.mxu0 0.0
        %828 = vmatpush.msra.mxu0 0.0
        %829 = vmatpush.msra.mxu0 0.0
        %830 = vmatpush.msra.mxu0 0.0
        %831 = vmatpush.msra.mxu0 0.0
        %832 = vmatpush.msra.mxu0 0.0
        %833 = vmatpush.msra.mxu0 0.0
        %834 = vmatpush.msra.mxu0 0.0
        %835 = vmatpush.msra.mxu0 0.0
        %836 = vmatpush.msra.mxu0 0.0
        %837 = vmatpush.msra.mxu0 0.0
        %v838 = vand.u32 %v287, 4294901760
        %839 = vmatpush.msra.mxu0 %v838
        %v840 = vand.u32 %v286, 4294901760
        %841 = vmatpush.msra.mxu0 %v840
        %v842 = vand.u32 %v285, 4294901760
        %843 = vmatpush.msra.mxu0 %v842
        %v844 = vand.u32 %v284, 4294901760
        %845 = vmatpush.msra.mxu0 %v844
        %v846 = vand.u32 %v664, 4294901760
        %847 = vmatmul.f32.gmra.mxu0 %v846
        %v848 = vpop.f32.mrf.mxu0
        %v849 = vadd.f32 %v824, %v848
        %850 = vdwg.mxu0
        %v851 = vadd.f32 %v661, %v849
        %v852 = vxor.u32 %v851, 2147483648
        %v853 = vmul.f32 %v852, 1.442695
        %v854 = vpow.pop %v853
        %v855 = vadd.f32 %v854, 1.0
        %v856 = vrcp.pop %v855
        %v857 = vmul.f32 %v855, %v856
        %v858 = vsub.f32 1.0, %v857
        %v859 = vmul.f32 %v856, %v858
        %v860 = vadd.f32 %v856, %v859
        %vm861 = vweird.f32 %v855
        %vm862 = vweird.f32 %v856
        %vm863 = vmor %vm861, %vm862
        %v864 = vsel %vm863, %v856, %v860
        %v865 = vand.u32 2147483647, %v855
        %vm866 = vcmp.eq.f32.partialorder %v865, 8.507059e+37
        %v867 = vand.u32 %v855, 2147483648
        %v868 = vor.u32 1.1754944e-38, %v867
        %v869 = vsel %vm866, %v868, %v864
        %v870 = vmul.f32 1.0, %v869
        %872 = vrot.lane.b32.xlu0 %v849, 64
        %v873 = vpop.permute.xlu0 %872
        %v875 = vmul.f32 %v870, %v873
        %877 = vrot.lane.b32.xlu0 %v875, 64
        %v878 = vpop.permute.xlu0 %877
        %v880 = vadd.f32 %v661, %v878
        %v881 = vtanh.pop %v880
        %v882 = vsub.f32 1.0, %v870
        %884 = vrot.lane.b32.xlu0 %v881, 96
        %v885 = vpop.permute.xlu0 %884
        %v887 = vmul.f32 %v882, %v885
        %888 = vrot.lane.b32.xlu0 %v309, 32
        %v889 = vpop.permute.xlu0 %888
        %v891 = vmul.f32 %v870, %v889
        %v892 = vadd.f32 %v887, %v891
        %894 = vrot.lane.b32.xlu0 %v892, 96
        %v895 = vpop.permute.xlu0 %894
        %897 = vst.msk [vmem:[#allocation2] sm:$0xff] %vm474, %v895
        %v898 = vsel %vm474, %v895, 0
        %900 = vmatpush.msra.mxu0 0.0
        %901 = vmatpush.msra.mxu0 0.0
        %902 = vmatpush.msra.mxu0 0.0
        %903 = vmatpush.msra.mxu0 0.0
        %904 = vmatpush.msra.mxu0 0.0
        %905 = vmatpush.msra.mxu0 0.0
        %906 = vmatpush.msra.mxu0 0.0
        %907 = vmatpush.msra.mxu0 0.0
        %908 = vmatpush.msra.mxu0 0.0
        %909 = vmatpush.msra.mxu0 0.0
        %910 = vmatpush.msra.mxu0 0.0
        %911 = vmatpush.msra.mxu0 0.0
        %v912 = vand.u32 %v291, 4294901760
        %913 = vmatpush.msra.mxu0 %v912
        %v914 = vand.u32 %v290, 4294901760
        %915 = vmatpush.msra.mxu0 %v914
        %v916 = vand.u32 %v289, 4294901760
        %917 = vmatpush.msra.mxu0 %v916
        %v918 = vand.u32 %v288, 4294901760
        %919 = vmatpush.msra.mxu0 %v918
        %v920 = vand.u32 %v898, 4294901760
        %v921 = vsub.f32 %v898, %v920
        %v922 = vand.u32 %v921, 4294901760
        %v923 = vsub.f32 %v921, %v922
        %v924 = vand.u32 %v923, 4294901760
        %925 = vmatmul.f32.gmra.mxu0 %v924
        %v926 = vpop.f32.mrf.mxu0
        %v927 = vadd.f32 %v299, %v926
        %928 = vdwg.mxu0
        %929 = vmatpush.msra.mxu0 0.0
        %930 = vmatpush.msra.mxu0 0.0
        %931 = vmatpush.msra.mxu0 0.0
        %932 = vmatpush.msra.mxu0 0.0
        %933 = vmatpush.msra.mxu0 0.0
        %934 = vmatpush.msra.mxu0 0.0
        %935 = vmatpush.msra.mxu0 0.0
        %936 = vmatpush.msra.mxu0 0.0
        %937 = vmatpush.msra.mxu0 0.0
        %938 = vmatpush.msra.mxu0 0.0
        %939 = vmatpush.msra.mxu0 0.0
        %940 = vmatpush.msra.mxu0 0.0
        %v941 = vand.u32 %v291, 4294901760
        %v942 = vsub.f32 %v291, %v941
        %v943 = vand.u32 %v942, 4294901760
        %v944 = vsub.f32 %v942, %v943
        %v945 = vand.u32 %v944, 4294901760
        %946 = vmatpush.msra.mxu0 %v945
        %v947 = vand.u32 %v290, 4294901760
        %v948 = vsub.f32 %v290, %v947
        %v949 = vand.u32 %v948, 4294901760
        %v950 = vsub.f32 %v948, %v949
        %v951 = vand.u32 %v950, 4294901760
        %952 = vmatpush.msra.mxu0 %v951
        %v953 = vand.u32 %v289, 4294901760
        %v954 = vsub.f32 %v289, %v953
        %v955 = vand.u32 %v954, 4294901760
        %v956 = vsub.f32 %v954, %v955
        %v957 = vand.u32 %v956, 4294901760
        %958 = vmatpush.msra.mxu0 %v957
        %v959 = vand.u32 %v288, 4294901760
        %v960 = vsub.f32 %v288, %v959
        %v961 = vand.u32 %v960, 4294901760
        %v962 = vsub.f32 %v960, %v961
        %v963 = vand.u32 %v962, 4294901760
        %964 = vmatpush.msra.mxu0 %v963
        %v965 = vand.u32 %v898, 4294901760
        %966 = vmatmul.f32.gmra.mxu0 %v965
        %v967 = vpop.f32.mrf.mxu0
        %v968 = vadd.f32 %v927, %v967
        %969 = vdwg.mxu0
        %970 = vmatpush.msra.mxu0 0.0
        %971 = vmatpush.msra.mxu0 0.0
        %972 = vmatpush.msra.mxu0 0.0
        %973 = vmatpush.msra.mxu0 0.0
        %974 = vmatpush.msra.mxu0 0.0
        %975 = vmatpush.msra.mxu0 0.0
        %976 = vmatpush.msra.mxu0 0.0
        %977 = vmatpush.msra.mxu0 0.0
        %978 = vmatpush.msra.mxu0 0.0
        %979 = vmatpush.msra.mxu0 0.0
        %980 = vmatpush.msra.mxu0 0.0
        %981 = vmatpush.msra.mxu0 0.0
        %v982 = vand.u32 %v291, 4294901760
        %v983 = vsub.f32 %v291, %v982
        %984 = vmatpush.msra.mxu0 %v983
        %v985 = vand.u32 %v290, 4294901760
        %v986 = vsub.f32 %v290, %v985
        %987 = vmatpush.msra.mxu0 %v986
        %v988 = vand.u32 %v289, 4294901760
        %v989 = vsub.f32 %v289, %v988
        %990 = vmatpush.msra.mxu0 %v989
        %v991 = vand.u32 %v288, 4294901760
        %v992 = vsub.f32 %v288, %v991
        %993 = vmatpush.msra.mxu0 %v992
        %v994 = vand.u32 %v898, 4294901760
        %v995 = vsub.f32 %v898, %v994
        %996 = vmatmul.f32.gmra.mxu0 %v995
        %v997 = vpop.f32.mrf.mxu0
        %v998 = vadd.f32 %v968, %v997
        %999 = vdwg.mxu0
        %1000 = vmatpush.msra.mxu0 0.0
        %1001 = vmatpush.msra.mxu0 0.0
        %1002 = vmatpush.msra.mxu0 0.0
        %1003 = vmatpush.msra.mxu0 0.0
        %1004 = vmatpush.msra.mxu0 0.0
        %1005 = vmatpush.msra.mxu0 0.0
        %1006 = vmatpush.msra.mxu0 0.0
        %1007 = vmatpush.msra.mxu0 0.0
        %1008 = vmatpush.msra.mxu0 0.0
        %1009 = vmatpush.msra.mxu0 0.0
        %1010 = vmatpush.msra.mxu0 0.0
        %1011 = vmatpush.msra.mxu0 0.0
        %v1012 = vand.u32 %v291, 4294901760
        %1013 = vmatpush.msra.mxu0 %v1012
        %v1014 = vand.u32 %v290, 4294901760
        %1015 = vmatpush.msra.mxu0 %v1014
        %v1016 = vand.u32 %v289, 4294901760
        %1017 = vmatpush.msra.mxu0 %v1016
        %v1018 = vand.u32 %v288, 4294901760
        %1019 = vmatpush.msra.mxu0 %v1018
        %v1020 = vand.u32 %v898, 4294901760
        %v1021 = vsub.f32 %v898, %v1020
        %v1022 = vand.u32 %v1021, 4294901760
        %1023 = vmatmul.f32.gmra.mxu0 %v1022
        %v1024 = vpop.f32.mrf.mxu0
        %v1025 = vadd.f32 %v998, %v1024
        %1026 = vdwg.mxu0
        %1027 = vmatpush.msra.mxu0 0.0
        %1028 = vmatpush.msra.mxu0 0.0
        %1029 = vmatpush.msra.mxu0 0.0
        %1030 = vmatpush.msra.mxu0 0.0
        %1031 = vmatpush.msra.mxu0 0.0
        %1032 = vmatpush.msra.mxu0 0.0
        %1033 = vmatpush.msra.mxu0 0.0
        %1034 = vmatpush.msra.mxu0 0.0
        %1035 = vmatpush.msra.mxu0 0.0
        %1036 = vmatpush.msra.mxu0 0.0
        %1037 = vmatpush.msra.mxu0 0.0
        %1038 = vmatpush.msra.mxu0 0.0
        %v1039 = vand.u32 %v291, 4294901760
        %v1040 = vsub.f32 %v291, %v1039
        %v1041 = vand.u32 %v1040, 4294901760
        %1042 = vmatpush.msra.mxu0 %v1041
        %v1043 = vand.u32 %v290, 4294901760
        %v1044 = vsub.f32 %v290, %v1043
        %v1045 = vand.u32 %v1044, 4294901760
        %1046 = vmatpush.msra.mxu0 %v1045
        %v1047 = vand.u32 %v289, 4294901760
        %v1048 = vsub.f32 %v289, %v1047
        %v1049 = vand.u32 %v1048, 4294901760
        %1050 = vmatpush.msra.mxu0 %v1049
        %v1051 = vand.u32 %v288, 4294901760
        %v1052 = vsub.f32 %v288, %v1051
        %v1053 = vand.u32 %v1052, 4294901760
        %1054 = vmatpush.msra.mxu0 %v1053
        %v1055 = vand.u32 %v898, 4294901760
        %1056 = vmatmul.f32.gmra.mxu0 %v1055
        %v1057 = vpop.f32.mrf.mxu0
        %v1058 = vadd.f32 %v1025, %v1057
        %1059 = vdwg.mxu0
        %1060 = vmatpush.msra.mxu0 0.0
        %1061 = vmatpush.msra.mxu0 0.0
        %1062 = vmatpush.msra.mxu0 0.0
        %1063 = vmatpush.msra.mxu0 0.0
        %1064 = vmatpush.msra.mxu0 0.0
        %1065 = vmatpush.msra.mxu0 0.0
        %1066 = vmatpush.msra.mxu0 0.0
        %1067 = vmatpush.msra.mxu0 0.0
        %1068 = vmatpush.msra.mxu0 0.0
        %1069 = vmatpush.msra.mxu0 0.0
        %1070 = vmatpush.msra.mxu0 0.0
        %1071 = vmatpush.msra.mxu0 0.0
        %v1072 = vand.u32 %v291, 4294901760
        %1073 = vmatpush.msra.mxu0 %v1072
        %v1074 = vand.u32 %v290, 4294901760
        %1075 = vmatpush.msra.mxu0 %v1074
        %v1076 = vand.u32 %v289, 4294901760
        %1077 = vmatpush.msra.mxu0 %v1076
        %v1078 = vand.u32 %v288, 4294901760
        %1079 = vmatpush.msra.mxu0 %v1078
        %v1080 = vand.u32 %v898, 4294901760
        %1081 = vmatmul.f32.gmra.mxu0 %v1080
        %v1082 = vpop.f32.mrf.mxu0
        %v1083 = vadd.f32 %v1058, %v1082
        %1084 = vdwg.mxu0
        %v1085 = vtanh.pop %v1083
        %v1087 = vsel %vm474, %v1085, 0
        %1089 = vmatpush.msra.mxu0 0.0
        %1090 = vmatpush.msra.mxu0 0.0
        %1091 = vmatpush.msra.mxu0 0.0
        %1092 = vmatpush.msra.mxu0 0.0
        %1093 = vmatpush.msra.mxu0 0.0
        %1094 = vmatpush.msra.mxu0 0.0
        %1095 = vmatpush.msra.mxu0 0.0
        %1096 = vmatpush.msra.mxu0 0.0
        %1097 = vmatpush.msra.mxu0 0.0
        %1098 = vmatpush.msra.mxu0 0.0
        %1099 = vmatpush.msra.mxu0 0.0
        %1100 = vmatpush.msra.mxu0 0.0
        %v1101 = vand.u32 %v295, 4294901760
        %1102 = vmatpush.msra.mxu0 %v1101
        %v1103 = vand.u32 %v294, 4294901760
        %1104 = vmatpush.msra.mxu0 %v1103
        %v1105 = vand.u32 %v293, 4294901760
        %1106 = vmatpush.msra.mxu0 %v1105
        %v1107 = vand.u32 %v292, 4294901760
        %1108 = vmatpush.msra.mxu0 %v1107
        %v1109 = vand.u32 %v1087, 4294901760
        %v1110 = vsub.f32 %v1087, %v1109
        %v1111 = vand.u32 %v1110, 4294901760
        %v1112 = vsub.f32 %v1110, %v1111
        %v1113 = vand.u32 %v1112, 4294901760
        %1114 = vmatmul.f32.gmra.mxu0 %v1113
        %v1115 = vpop.f32.mrf.mxu0
        %v1116 = vadd.f32 %v300, %v1115
        %1117 = vdwg.mxu0
        %1118 = vmatpush.msra.mxu0 0.0
        %1119 = vmatpush.msra.mxu0 0.0
        %1120 = vmatpush.msra.mxu0 0.0
        %1121 = vmatpush.msra.mxu0 0.0
        %1122 = vmatpush.msra.mxu0 0.0
        %1123 = vmatpush.msra.mxu0 0.0
        %1124 = vmatpush.msra.mxu0 0.0
        %1125 = vmatpush.msra.mxu0 0.0
        %1126 = vmatpush.msra.mxu0 0.0
        %1127 = vmatpush.msra.mxu0 0.0
        %1128 = vmatpush.msra.mxu0 0.0
        %1129 = vmatpush.msra.mxu0 0.0
        %v1130 = vand.u32 %v295, 4294901760
        %v1131 = vsub.f32 %v295, %v1130
        %v1132 = vand.u32 %v1131, 4294901760
        %v1133 = vsub.f32 %v1131, %v1132
        %v1134 = vand.u32 %v1133, 4294901760
        %1135 = vmatpush.msra.mxu0 %v1134
        %v1136 = vand.u32 %v294, 4294901760
        %v1137 = vsub.f32 %v294, %v1136
        %v1138 = vand.u32 %v1137, 4294901760
        %v1139 = vsub.f32 %v1137, %v1138
        %v1140 = vand.u32 %v1139, 4294901760
        %1141 = vmatpush.msra.mxu0 %v1140
        %v1142 = vand.u32 %v293, 4294901760
        %v1143 = vsub.f32 %v293, %v1142
        %v1144 = vand.u32 %v1143, 4294901760
        %v1145 = vsub.f32 %v1143, %v1144
        %v1146 = vand.u32 %v1145, 4294901760
        %1147 = vmatpush.msra.mxu0 %v1146
        %v1148 = vand.u32 %v292, 4294901760
        %v1149 = vsub.f32 %v292, %v1148
        %v1150 = vand.u32 %v1149, 4294901760
        %v1151 = vsub.f32 %v1149, %v1150
        %v1152 = vand.u32 %v1151, 4294901760
        %1153 = vmatpush.msra.mxu0 %v1152
        %v1154 = vand.u32 %v1087, 4294901760
        %1155 = vmatmul.f32.gmra.mxu0 %v1154
        %v1156 = vpop.f32.mrf.mxu0
        %v1157 = vadd.f32 %v1116, %v1156
        %1158 = vdwg.mxu0
        %1159 = vmatpush.msra.mxu0 0.0
        %1160 = vmatpush.msra.mxu0 0.0
        %1161 = vmatpush.msra.mxu0 0.0
        %1162 = vmatpush.msra.mxu0 0.0
        %1163 = vmatpush.msra.mxu0 0.0
        %1164 = vmatpush.msra.mxu0 0.0
        %1165 = vmatpush.msra.mxu0 0.0
        %1166 = vmatpush.msra.mxu0 0.0
        %1167 = vmatpush.msra.mxu0 0.0
        %1168 = vmatpush.msra.mxu0 0.0
        %1169 = vmatpush.msra.mxu0 0.0
        %1170 = vmatpush.msra.mxu0 0.0
        %v1171 = vand.u32 %v295, 4294901760
        %v1172 = vsub.f32 %v295, %v1171
        %1173 = vmatpush.msra.mxu0 %v1172
        %v1174 = vand.u32 %v294, 4294901760
        %v1175 = vsub.f32 %v294, %v1174
        %1176 = vmatpush.msra.mxu0 %v1175
        %v1177 = vand.u32 %v293, 4294901760
        %v1178 = vsub.f32 %v293, %v1177
        %1179 = vmatpush.msra.mxu0 %v1178
        %v1180 = vand.u32 %v292, 4294901760
        %v1181 = vsub.f32 %v292, %v1180
        %1182 = vmatpush.msra.mxu0 %v1181
        %v1183 = vand.u32 %v1087, 4294901760
        %v1184 = vsub.f32 %v1087, %v1183
        %1185 = vmatmul.f32.gmra.mxu0 %v1184
        %v1186 = vpop.f32.mrf.mxu0
        %v1187 = vadd.f32 %v1157, %v1186
        %1188 = vdwg.mxu0
        %1189 = vmatpush.msra.mxu0 0.0
        %1190 = vmatpush.msra.mxu0 0.0
        %1191 = vmatpush.msra.mxu0 0.0
        %1192 = vmatpush.msra.mxu0 0.0
        %1193 = vmatpush.msra.mxu0 0.0
        %1194 = vmatpush.msra.mxu0 0.0
        %1195 = vmatpush.msra.mxu0 0.0
        %1196 = vmatpush.msra.mxu0 0.0
        %1197 = vmatpush.msra.mxu0 0.0
        %1198 = vmatpush.msra.mxu0 0.0
        %1199 = vmatpush.msra.mxu0 0.0
        %1200 = vmatpush.msra.mxu0 0.0
        %v1201 = vand.u32 %v295, 4294901760
        %1202 = vmatpush.msra.mxu0 %v1201
        %v1203 = vand.u32 %v294, 4294901760
        %1204 = vmatpush.msra.mxu0 %v1203
        %v1205 = vand.u32 %v293, 4294901760
        %1206 = vmatpush.msra.mxu0 %v1205
        %v1207 = vand.u32 %v292, 4294901760
        %1208 = vmatpush.msra.mxu0 %v1207
        %v1209 = vand.u32 %v1087, 4294901760
        %v1210 = vsub.f32 %v1087, %v1209
        %v1211 = vand.u32 %v1210, 4294901760
        %1212 = vmatmul.f32.gmra.mxu0 %v1211
        %v1213 = vpop.f32.mrf.mxu0
        %v1214 = vadd.f32 %v1187, %v1213
        %1215 = vdwg.mxu0
        %1216 = vmatpush.msra.mxu0 0.0
        %1217 = vmatpush.msra.mxu0 0.0
        %1218 = vmatpush.msra.mxu0 0.0
        %1219 = vmatpush.msra.mxu0 0.0
        %1220 = vmatpush.msra.mxu0 0.0
        %1221 = vmatpush.msra.mxu0 0.0
        %1222 = vmatpush.msra.mxu0 0.0
        %1223 = vmatpush.msra.mxu0 0.0
        %1224 = vmatpush.msra.mxu0 0.0
        %1225 = vmatpush.msra.mxu0 0.0
        %1226 = vmatpush.msra.mxu0 0.0
        %1227 = vmatpush.msra.mxu0 0.0
        %v1228 = vand.u32 %v295, 4294901760
        %v1229 = vsub.f32 %v295, %v1228
        %v1230 = vand.u32 %v1229, 4294901760
        %1231 = vmatpush.msra.mxu0 %v1230
        %v1232 = vand.u32 %v294, 4294901760
        %v1233 = vsub.f32 %v294, %v1232
        %v1234 = vand.u32 %v1233, 4294901760
        %1235 = vmatpush.msra.mxu0 %v1234
        %v1236 = vand.u32 %v293, 4294901760
        %v1237 = vsub.f32 %v293, %v1236
        %v1238 = vand.u32 %v1237, 4294901760
        %1239 = vmatpush.msra.mxu0 %v1238
        %v1240 = vand.u32 %v292, 4294901760
        %v1241 = vsub.f32 %v292, %v1240
        %v1242 = vand.u32 %v1241, 4294901760
        %1243 = vmatpush.msra.mxu0 %v1242
        %v1244 = vand.u32 %v1087, 4294901760
        %1245 = vmatmul.f32.gmra.mxu0 %v1244
        %v1246 = vpop.f32.mrf.mxu0
        %v1247 = vadd.f32 %v1214, %v1246
        %1248 = vdwg.mxu0
        %1249 = vmatpush.msra.mxu0 0.0
        %1250 = vmatpush.msra.mxu0 0.0
        %1251 = vmatpush.msra.mxu0 0.0
        %1252 = vmatpush.msra.mxu0 0.0
        %1253 = vmatpush.msra.mxu0 0.0
        %1254 = vmatpush.msra.mxu0 0.0
        %1255 = vmatpush.msra.mxu0 0.0
        %1256 = vmatpush.msra.mxu0 0.0
        %1257 = vmatpush.msra.mxu0 0.0
        %1258 = vmatpush.msra.mxu0 0.0
        %1259 = vmatpush.msra.mxu0 0.0
        %1260 = vmatpush.msra.mxu0 0.0
        %v1261 = vand.u32 %v295, 4294901760
        %1262 = vmatpush.msra.mxu0 %v1261
        %v1263 = vand.u32 %v294, 4294901760
        %1264 = vmatpush.msra.mxu0 %v1263
        %v1265 = vand.u32 %v293, 4294901760
        %1266 = vmatpush.msra.mxu0 %v1265
        %v1267 = vand.u32 %v292, 4294901760
        %1268 = vmatpush.msra.mxu0 %v1267
        %v1269 = vand.u32 %v1087, 4294901760
        %1270 = vmatmul.f32.gmra.mxu0 %v1269
        %v1271 = vpop.f32.mrf.mxu0
        %v1272 = vadd.f32 %v1247, %v1271
        %1273 = vdwg.mxu0
        %vm1274 = vcmask 31744
        %v1275 = vsel %vm1274, %v1272, -inf
        %1276 = vmax.xlane.f32.xlu0 %v1275
        %v1277 = vpop.xlane.xlu0 %1276
        %v1278 = vsub.f32 %v1272, %v1277
        %v1279 = vmul.f32 %v1278, 1.442695
        %v1280 = vpow.pop %v1279
        %v1281 = vsel %vm1274, %v1280, 0.0
        %1282 = vadd.xlane.f32.xlu0 %v1281
        %v1283 = vpop.xlane.xlu0 %1282
        %v1284 = vlog2.pop %v1283
        %v1285 = vmul.f32 %v1284, 0.6931472
        %v1286 = vsub.f32 0.0, %v1285
        %v1287 = vlaneseq
        %v1288 = vand.u32 %v1287, 127
        %vm1289 = vcmp.eq.f32.partialorder %v1272, %v1277
        %v1290 = vsel %vm1289, %v1288, 4
        %v1291 = vsel %vm1274, %v1290, 2147483647
        %v1292 = vand.u32 %v1291, 65535
        %v1293 = vshra.s32 %v1291, 16
        %v1294 = vcvt.s32.f32 %v1292
        %v1295 = vcvt.s32.f32 %v1293
        %1296 = vmin.xlane.f32.xlu0 %v1295
        %v1297 = vpop.xlane.xlu0 %1296
        %vm1298 = vcmp.eq.f32.partialorder %v1295, %v1297
        %v1299 = vsel %vm1298, %v1294, inf
        %1300 = vmin.xlane.f32.xlu0 %v1299
        %v1301 = vpop.xlane.xlu0 %1300
        %v1302 = vcvt.f32.s32 %v1301
        %v1303 = vcvt.f32.s32 %v1297
        %v1304 = vshll.u32 %v1303, 16
        %v1305 = vadd.s32 %v1304, %v1302
        %v1306 = vcvt.s32.f32 %v1305
        %1307 = vst.msk [vmem:[%s270] sm:$0xff] %vm474, %v895
        %vm1308 = vcmask 269568
        %1309 = vst.msk [vmem:[%s270] sm:$0xff] %vm1308, %v1083
        %vm1310 = vcmask 277768
        %1311 = vst.msk [vmem:[%s270] sm:$0xff] %vm1310, %v1286
        %vm1312 = vcmask 285968
        %1313 = vst.msk [vmem:[%s270] sm:$0xff] %vm1312, %v1306
        %vm1314 = vcmask 1047832
        %1315 = vst.msk [vmem:[%s270] sm:$0xff] %vm1314, 0.0
        %p1316 = scmp.lt.s32.totalorder %s18, 7
        %s1317 = scalar_select %p1316, %s18, 7
        %s1318 = smul.addr %s1317, 8
        %s1319 = scalar_lea.vmem %s5, %s1318
        // Predicated region
        $region53: #{ac_act_rollout.1} parent=39 // pred_check
          %p1320 = pneg %p151
        $region54: #{ac_act_rollout.1} parent=39 // pred_check_branch
          %1322 = sbr.rel (%p1320) target = $region56
        $region55: #{ac_act_rollout.1} parent=39 // pred_region
          _
        $region56: #{ac_act_rollout.1} parent=39 // pred_fallthru
          _
      $region40: #{ac_act_rollout.1} parent=5 // pred_fallthru
        _
      %p1323 = scmp.le.s32.totalorder 2, %s13
      // Predicated region
      $region57: #{ac_act_rollout.1} parent=5 // pred_check
        %p1324 = pneg %p1323
      $region58: #{ac_act_rollout.1} parent=5 // pred_check_branch
        %1326 = sbr.rel (%p1324) target = $region60
      $region59: #{ac_act_rollout.1} parent=5 // pred_region
        %s1327 = ssub.s32 %s13, 2
        // Predicated region
        $region61: #{ac_act_rollout.1} parent=59 // pred_check
          %p1328 = pneg %p157
        $region62: #{ac_act_rollout.1} parent=59 // pred_check_branch
          %1330 = sbr.rel (%p1328) target = $region64
        $region63: #{ac_act_rollout.1} parent=59 // pred_region
          %p1331 = scmp.lt.s32.totalorder %s19, 7
          %s1332 = scalar_select %p1331, %s19, 7
          %s1333 = smul.addr %s1332, 8
          %s1334 = scalar_lea.vmem %s5, %s1333
        $region64: #{ac_act_rollout.1} parent=59 // pred_fallthru
          _
      $region60: #{ac_act_rollout.1} parent=5 // pred_fallthru
        _
    $region6: #{ac_act_rollout.1} parent=1 // loop_footer
      %s17 = sadd.s32 1, %s13
    $region7: #{ac_act_rollout.1} parent=1 // loop_footer_branch
      %12 = sbr.rel target = $region3
    $region8: #{ac_act_rollout.1} parent=1 // loop_exit
      _
    %1335 = vsyncpa [#allocation4], 1
    %s1336 = scalar_lea.sflag [#allocation4], 1
    %1337 = vsyncpa %s1336, 1
    %1338 = vsyncpa [#allocation6], 1

</llo_original>
